<compile_context>
chip_gen: v6e
topology: v6e:2x2x1
jax: 0.10.0
libtpu: 0.0.40
codegen_flags: <defaults>
</compile_context>

<pallas_src>
import functools

import jax
import jax.numpy as jnp
from jax.experimental import pallas as pl
from jax.experimental.pallas import tpu as pltpu


def _decoder_kernel(x_ref, wih_ref, whh_ref, b_ref, h0_ref, c0_ref,
                    wfc_ref, bfc_ref,
                    pred_ref, hout_ref, cout_ref,
                    xg_scr, hall_scr,
                    *, seq_len, batch, hidden_size):
    B = batch
    H = hidden_size

    # ---- Phase 1: input projections for all time steps (no recurrence dep) ----
    # (S*B, E) @ (E, 4H) + b  ->  (S*B, 4H), bias folded in here once.
    xg_scr[...] = (jnp.dot(x_ref[...], wih_ref[...],
                           preferred_element_type=jnp.float32)
                   + b_ref[...])

    whh = whh_ref[...]        # (H, 4H), hoisted out of the loop

    # ---- Phase 2: serial recurrence (one small matmul per step) ----
    def step(t, carry):
        h, c = carry                                   # (B, H) each, in vregs
        row = t * B
        gates = (xg_scr[pl.ds(row, B), :]
                 + jnp.dot(h, whh, preferred_element_type=jnp.float32))  # (B, 4H)

        i_g = jax.nn.sigmoid(gates[:, 0 * H:1 * H])
        f_g = jax.nn.sigmoid(gates[:, 1 * H:2 * H])
        g_g = jnp.tanh(gates[:, 2 * H:3 * H])
        o_g = jax.nn.sigmoid(gates[:, 3 * H:4 * H])

        c_new = f_g * c + i_g * g_g
        h_new = o_g * jnp.tanh(c_new)

        hall_scr[pl.ds(row, B), :] = h_new             # stash h_t for phase 3
        return (h_new, c_new)

    h_fin, c_fin = jax.lax.fori_loop(
        0, seq_len, step, (h0_ref[...], c0_ref[...]), unroll=True)

    # Final state written exactly once.
    hout_ref[...] = h_fin
    cout_ref[...] = c_fin

    # ---- Phase 3: output projection for all time steps in one matmul ----
    pred_ref[...] = (jnp.dot(hall_scr[...], wfc_ref[...],
                             preferred_element_type=jnp.float32)
                     + bfc_ref[...])


def decoder_forward(input_seq, hidden, cell, params):
    """Mirrors Decoder.forward(input_seq, hidden, cell).

    input_seq: int32 (B, S) token ids
    hidden, cell: float32 (1, B, H)
    returns (predictions (B, S, V), hidden (1, B, H), cell (1, B, H))
    """
    emb_table = params["embedding"]       # (V, E)
    w_ih = params["w_ih"]                 # (4H, E)  -- PyTorch layout
    w_hh = params["w_hh"]                 # (4H, H)
    b = params["b_ih"] + params["b_hh"]   # (4H,)
    w_fc = params["w_fc"]                 # (V, H)
    b_fc = params["b_fc"]                 # (V,)

    B, S = input_seq.shape
    V, E = emb_table.shape
    H = w_hh.shape[1]

    # Embedding gather directly in time-major order, flattened to rows t*B + b.
    x_flat = emb_table[input_seq.T].reshape(S * B, E)  # (S*B, E)

    wih_t = w_ih.T                                     # (E, 4H)
    whh_t = w_hh.T                                     # (H, 4H)
    b_row = b.reshape(1, 4 * H)                        # (1, 4H)
    wfc_t = w_fc.T                                     # (H, V)
    bfc_row = b_fc.reshape(1, V)                       # (1, V)

    h0 = hidden[0]                                     # (B, H)
    c0 = cell[0]                                       # (B, H)

    kernel = functools.partial(
        _decoder_kernel, seq_len=S, batch=B, hidden_size=H)

    vmem_spec = pl.BlockSpec(memory_space=pltpu.MemorySpace.VMEM)

    pred_flat, h_out, c_out = pl.pallas_call(
        kernel,
        out_shape=(
            jax.ShapeDtypeStruct((S * B, V), jnp.float32),
            jax.ShapeDtypeStruct((B, H), jnp.float32),
            jax.ShapeDtypeStruct((B, H), jnp.float32),
        ),
        in_specs=[vmem_spec] * 8,
        out_specs=(vmem_spec, vmem_spec, vmem_spec),
        scratch_shapes=[
            pltpu.VMEM((S * B, 4 * H), jnp.float32),   # precomputed input projections
            pltpu.VMEM((S * B, H), jnp.float32),       # all h_t for batched FC
        ],
    )(x_flat, wih_t, whh_t, b_row, h0, c0, wfc_t, bfc_row)

    predictions = pred_flat.reshape(S, B, V).transpose(1, 0, 2)   # (B, S, V)
    return predictions, h_out[None], c_out[None]


def _reference_forward(input_seq, hidden, cell, params):
    """Pure-JAX reference (matches torch.nn.LSTM gate ordering i,f,g,o)."""
    emb = params["embedding"][input_seq]              # (B, S, E)
    w_ih, w_hh = params["w_ih"], params["w_hh"]
    b = params["b_ih"] + params["b_hh"]
    H = w_hh.shape[1]
    h, c = hidden[0], cell[0]

    def step(carry, x_t):
        h, c = carry
        gates = x_t @ w_ih.T + h @ w_hh.T + b
        i = jax.nn.sigmoid(gates[:, 0 * H:1 * H])
        f = jax.nn.sigmoid(gates[:, 1 * H:2 * H])
        g = jnp.tanh(gates[:, 2 * H:3 * H])
        o = jax.nn.sigmoid(gates[:, 3 * H:4 * H])
        c = f * c + i * g
        h = o * jnp.tanh(c)
        return (h, c), h

    (h, c), outs = jax.lax.scan(step, (h, c), jnp.transpose(emb, (1, 0, 2)))
    outputs = jnp.transpose(outs, (1, 0, 2))          # (B, S, H)
    preds = outputs @ params["w_fc"].T + params["b_fc"]
    return preds, h[None], c[None]


if __name__ == "__main__":
    output_size = 64    # vocab
    hidden_size = 32
    embedding_dim = 16
    batch = 2
    seq = 8

    key = jax.random.PRNGKey(0)
    keys = jax.random.split(key, 10)

    params = {
        "embedding": jax.random.normal(keys[0], (output_size, embedding_dim),
                                       jnp.float32) * 0.1,
        "w_ih": jax.random.normal(keys[1], (4 * hidden_size, embedding_dim),
                                  jnp.float32) * 0.1,
        "w_hh": jax.random.normal(keys[2], (4 * hidden_size, hidden_size),
                                  jnp.float32) * 0.1,
        "b_ih": jax.random.normal(keys[3], (4 * hidden_size,), jnp.float32) * 0.1,
        "b_hh": jax.random.normal(keys[4], (4 * hidden_size,), jnp.float32) * 0.1,
        "w_fc": jax.random.normal(keys[5], (output_size, hidden_size),
                                  jnp.float32) * 0.1,
        "b_fc": jax.random.normal(keys[6], (output_size,), jnp.float32) * 0.1,
    }

    input_seq = jax.random.randint(keys[7], (batch, seq), 0, output_size,
                                   dtype=jnp.int32)
    hidden0 = jax.random.normal(keys[8], (1, batch, hidden_size), jnp.float32)
    cell0 = jax.random.normal(keys[9], (1, batch, hidden_size), jnp.float32)

    preds, h_out, c_out = jax.block_until_ready(
        decoder_forward(input_seq, hidden0, cell0, params))

    preds_ref, h_ref, c_ref = _reference_forward(input_seq, hidden0, cell0, params)

    assert preds.shape == (batch, seq, output_size)
    assert h_out.shape == (1, batch, hidden_size)
    assert c_out.shape == (1, batch, hidden_size)
    assert jnp.allclose(preds, preds_ref, atol=1e-4), "predictions mismatch"
    assert jnp.allclose(h_out, h_ref, atol=1e-4), "hidden mismatch"
    assert jnp.allclose(c_out, c_ref, atol=1e-4), "cell mismatch"

    print("KERNEL_OK")
</pallas_src>

<mosaic_0001>
module attributes {stable_mosaic.version = 11 : i64} {
  func.func @_decoder_kernel(%arg0: memref<16x16xf32, #tpu.memory_space<vmem>>, %arg1: memref<16x128xf32, #tpu.memory_space<vmem>>, %arg2: memref<32x128xf32, #tpu.memory_space<vmem>>, %arg3: memref<1x128xf32, #tpu.memory_space<vmem>>, %arg4: memref<2x32xf32, #tpu.memory_space<vmem>>, %arg5: memref<2x32xf32, #tpu.memory_space<vmem>>, %arg6: memref<32x64xf32, #tpu.memory_space<vmem>>, %arg7: memref<1x64xf32, #tpu.memory_space<vmem>>, %arg8: memref<16x64xf32, #tpu.memory_space<vmem>>, %arg9: memref<2x32xf32, #tpu.memory_space<vmem>>, %arg10: memref<2x32xf32, #tpu.memory_space<vmem>>, %arg11: memref<16x128xf32, #tpu.memory_space<vmem>>, %arg12: memref<16x32xf32, #tpu.memory_space<vmem>>) attributes {dimension_semantics = [], scalar_prefetch = 0 : i64, scratch_operands = 2 : i64, tpu.core_type = #tpu.core_type<tc>} {
    %c0 = arith.constant 0 : index
    %c0_0 = arith.constant 0 : index
    %0 = vector.load %arg0[%c0, %c0_0] : memref<16x16xf32, #tpu.memory_space<vmem>>, vector<16x16xf32>
    %c0_1 = arith.constant 0 : index
    %c0_2 = arith.constant 0 : index
    %1 = vector.load %arg1[%c0_1, %c0_2] : memref<16x128xf32, #tpu.memory_space<vmem>>, vector<16x128xf32>
    %cst = arith.constant dense<0.000000e+00> : vector<16x128xf32>
    %2 = tpu.matmul %0, %1, %cst {dimension_numbers = #tpu.dot_dimension_numbers<[1], [0], [0], [1], [0, 0, 1, 1], [], []>} : vector<16x16xf32>, vector<16x128xf32>, vector<16x128xf32> -> vector<16x128xf32>
    %c0_3 = arith.constant 0 : index
    %c0_4 = arith.constant 0 : index
    %3 = vector.load %arg3[%c0_3, %c0_4] : memref<1x128xf32, #tpu.memory_space<vmem>>, vector<1x128xf32>
    %4 = vector.broadcast %3 : vector<1x128xf32> to vector<16x128xf32>
    %5 = arith.addf %2, %4 : vector<16x128xf32>
    %c0_5 = arith.constant 0 : index
    %c0_6 = arith.constant 0 : index
    %6 = vector.load %arg11[%c0_5, %c0_6] : memref<16x128xf32, #tpu.memory_space<vmem>>, vector<16x128xf32>
    tpu.vector_store %arg11[%c0_5, %c0_6], %5 {strides = array<i32>} : memref<16x128xf32, #tpu.memory_space<vmem>>, vector<16x128xf32>,
    %c0_7 = arith.constant 0 : index
    %c0_8 = arith.constant 0 : index
    %7 = vector.load %arg2[%c0_7, %c0_8] : memref<32x128xf32, #tpu.memory_space<vmem>>, vector<32x128xf32>
    %c0_9 = arith.constant 0 : index
    %c0_10 = arith.constant 0 : index
    %8 = vector.load %arg4[%c0_9, %c0_10] : memref<2x32xf32, #tpu.memory_space<vmem>>, vector<2x32xf32>
    %c0_11 = arith.constant 0 : index
    %c0_12 = arith.constant 0 : index
    %9 = vector.load %arg5[%c0_11, %c0_12] : memref<2x32xf32, #tpu.memory_space<vmem>>, vector<2x32xf32>
    %c0_i32 = arith.constant 0 : i32
    %c2_i32 = arith.constant 2 : i32
    %10 = arith.muli %c0_i32, %c2_i32 : i32
    %11 = arith.index_cast %10 : i32 to index
    %c0_13 = arith.constant 0 : index
    %12 = vector.load %arg11[%11, %c0_13] : memref<16x128xf32, #tpu.memory_space<vmem>>, vector<2x128xf32>
    %cst_14 = arith.constant dense<0.000000e+00> : vector<2x128xf32>
    %13 = tpu.matmul %8, %7, %cst_14 {dimension_numbers = #tpu.dot_dimension_numbers<[1], [0], [0], [1], [0, 0, 1, 1], [], []>} : vector<2x32xf32>, vector<32x128xf32>, vector<2x128xf32> -> vector<2x128xf32>
    %14 = arith.addf %12, %13 : vector<2x128xf32>
    %15 = vector.extract_strided_slice %14 {offsets = [0, 0], sizes = [2, 32], strides = [1, 1]} : vector<2x128xf32> to vector<2x32xf32>
    %16 = arith.negf %15 : vector<2x32xf32>
    %17 = math.exp %16 : vector<2x32xf32>
    %cst_15 = arith.constant 1.000000e+00 : f32
    %18 = vector.broadcast %cst_15 : f32 to vector<2x32xf32>
    %19 = arith.addf %18, %17 : vector<2x32xf32>
    %20 = arith.divf %18, %19 : vector<2x32xf32>
    %21 = vector.extract_strided_slice %14 {offsets = [0, 32], sizes = [2, 32], strides = [1, 1]} : vector<2x128xf32> to vector<2x32xf32>
    %22 = arith.negf %21 : vector<2x32xf32>
    %23 = math.exp %22 : vector<2x32xf32>
    %cst_16 = arith.constant 1.000000e+00 : f32
    %24 = vector.broadcast %cst_16 : f32 to vector<2x32xf32>
    %25 = arith.addf %24, %23 : vector<2x32xf32>
    %26 = arith.divf %24, %25 : vector<2x32xf32>
    %27 = vector.extract_strided_slice %14 {offsets = [0, 64], sizes = [2, 32], strides = [1, 1]} : vector<2x128xf32> to vector<2x32xf32>
    %28 = math.tanh %27 : vector<2x32xf32>
    %29 = vector.extract_strided_slice %14 {offsets = [0, 96], sizes = [2, 32], strides = [1, 1]} : vector<2x128xf32> to vector<2x32xf32>
    %30 = arith.negf %29 : vector<2x32xf32>
    %31 = math.exp %30 : vector<2x32xf32>
    %cst_17 = arith.constant 1.000000e+00 : f32
    %32 = vector.broadcast %cst_17 : f32 to vector<2x32xf32>
    %33 = arith.addf %32, %31 : vector<2x32xf32>
    %34 = arith.divf %32, %33 : vector<2x32xf32>
    %35 = arith.mulf %26, %9 : vector<2x32xf32>
    %36 = arith.mulf %20, %28 : vector<2x32xf32>
    %37 = arith.addf %35, %36 : vector<2x32xf32>
    %38 = math.tanh %37 : vector<2x32xf32>
    %39 = arith.mulf %34, %38 : vector<2x32xf32>
    %40 = arith.index_cast %10 : i32 to index
    %c0_18 = arith.constant 0 : index
    %41 = vector.load %arg12[%40, %c0_18] : memref<16x32xf32, #tpu.memory_space<vmem>>, vector<2x32xf32>
    tpu.vector_store %arg12[%40, %c0_18], %39 {strides = array<i32>} : memref<16x32xf32, #tpu.memory_space<vmem>>, vector<2x32xf32>,
    %c1_i32 = arith.constant 1 : i32
    %c2_i32_19 = arith.constant 2 : i32
    %42 = arith.muli %c1_i32, %c2_i32_19 : i32
    %43 = arith.index_cast %42 : i32 to index
    %c0_20 = arith.constant 0 : index
    %44 = vector.load %arg11[%43, %c0_20] : memref<16x128xf32, #tpu.memory_space<vmem>>, vector<2x128xf32>
    %cst_21 = arith.constant dense<0.000000e+00> : vector<2x128xf32>
    %45 = tpu.matmul %39, %7, %cst_21 {dimension_numbers = #tpu.dot_dimension_numbers<[1], [0], [0], [1], [0, 0, 1, 1], [], []>} : vector<2x32xf32>, vector<32x128xf32>, vector<2x128xf32> -> vector<2x128xf32>
    %46 = arith.addf %44, %45 : vector<2x128xf32>
    %47 = vector.extract_strided_slice %46 {offsets = [0, 0], sizes = [2, 32], strides = [1, 1]} : vector<2x128xf32> to vector<2x32xf32>
    %48 = arith.negf %47 : vector<2x32xf32>
    %49 = math.exp %48 : vector<2x32xf32>
    %cst_22 = arith.constant 1.000000e+00 : f32
    %50 = vector.broadcast %cst_22 : f32 to vector<2x32xf32>
    %51 = arith.addf %50, %49 : vector<2x32xf32>
    %52 = arith.divf %50, %51 : vector<2x32xf32>
    %53 = vector.extract_strided_slice %46 {offsets = [0, 32], sizes = [2, 32], strides = [1, 1]} : vector<2x128xf32> to vector<2x32xf32>
    %54 = arith.negf %53 : vector<2x32xf32>
    %55 = math.exp %54 : vector<2x32xf32>
    %cst_23 = arith.constant 1.000000e+00 : f32
    %56 = vector.broadcast %cst_23 : f32 to vector<2x32xf32>
    %57 = arith.addf %56, %55 : vector<2x32xf32>
    %58 = arith.divf %56, %57 : vector<2x32xf32>
    %59 = vector.extract_strided_slice %46 {offsets = [0, 64], sizes = [2, 32], strides = [1, 1]} : vector<2x128xf32> to vector<2x32xf32>
    %60 = math.tanh %59 : vector<2x32xf32>
    %61 = vector.extract_strided_slice %46 {offsets = [0, 96], sizes = [2, 32], strides = [1, 1]} : vector<2x128xf32> to vector<2x32xf32>
    %62 = arith.negf %61 : vector<2x32xf32>
    %63 = math.exp %62 : vector<2x32xf32>
    %cst_24 = arith.constant 1.000000e+00 : f32
    %64 = vector.broadcast %cst_24 : f32 to vector<2x32xf32>
    %65 = arith.addf %64, %63 : vector<2x32xf32>
    %66 = arith.divf %64, %65 : vector<2x32xf32>
    %67 = arith.mulf %58, %37 : vector<2x32xf32>
    %68 = arith.mulf %52, %60 : vector<2x32xf32>
    %69 = arith.addf %67, %68 : vector<2x32xf32>
    %70 = math.tanh %69 : vector<2x32xf32>
    %71 = arith.mulf %66, %70 : vector<2x32xf32>
    %72 = arith.index_cast %42 : i32 to index
    %c0_25 = arith.constant 0 : index
    %73 = vector.load %arg12[%72, %c0_25] : memref<16x32xf32, #tpu.memory_space<vmem>>, vector<2x32xf32>
    tpu.vector_store %arg12[%72, %c0_25], %71 {strides = array<i32>} : memref<16x32xf32, #tpu.memory_space<vmem>>, vector<2x32xf32>,
    %c2_i32_26 = arith.constant 2 : i32
    %c2_i32_27 = arith.constant 2 : i32
    %74 = arith.muli %c2_i32_26, %c2_i32_27 : i32
    %75 = arith.index_cast %74 : i32 to index
    %c0_28 = arith.constant 0 : index
    %76 = vector.load %arg11[%75, %c0_28] : memref<16x128xf32, #tpu.memory_space<vmem>>, vector<2x128xf32>
    %cst_29 = arith.constant dense<0.000000e+00> : vector<2x128xf32>
    %77 = tpu.matmul %71, %7, %cst_29 {dimension_numbers = #tpu.dot_dimension_numbers<[1], [0], [0], [1], [0, 0, 1, 1], [], []>} : vector<2x32xf32>, vector<32x128xf32>, vector<2x128xf32> -> vector<2x128xf32>
    %78 = arith.addf %76, %77 : vector<2x128xf32>
    %79 = vector.extract_strided_slice %78 {offsets = [0, 0], sizes = [2, 32], strides = [1, 1]} : vector<2x128xf32> to vector<2x32xf32>
    %80 = arith.negf %79 : vector<2x32xf32>
    %81 = math.exp %80 : vector<2x32xf32>
    %cst_30 = arith.constant 1.000000e+00 : f32
    %82 = vector.broadcast %cst_30 : f32 to vector<2x32xf32>
    %83 = arith.addf %82, %81 : vector<2x32xf32>
    %84 = arith.divf %82, %83 : vector<2x32xf32>
    %85 = vector.extract_strided_slice %78 {offsets = [0, 32], sizes = [2, 32], strides = [1, 1]} : vector<2x128xf32> to vector<2x32xf32>
    %86 = arith.negf %85 : vector<2x32xf32>
    %87 = math.exp %86 : vector<2x32xf32>
    %cst_31 = arith.constant 1.000000e+00 : f32
    %88 = vector.broadcast %cst_31 : f32 to vector<2x32xf32>
    %89 = arith.addf %88, %87 : vector<2x32xf32>
    %90 = arith.divf %88, %89 : vector<2x32xf32>
    %91 = vector.extract_strided_slice %78 {offsets = [0, 64], sizes = [2, 32], strides = [1, 1]} : vector<2x128xf32> to vector<2x32xf32>
    %92 = math.tanh %91 : vector<2x32xf32>
    %93 = vector.extract_strided_slice %78 {offsets = [0, 96], sizes = [2, 32], strides = [1, 1]} : vector<2x128xf32> to vector<2x32xf32>
    %94 = arith.negf %93 : vector<2x32xf32>
    %95 = math.exp %94 : vector<2x32xf32>
    %cst_32 = arith.constant 1.000000e+00 : f32
    %96 = vector.broadcast %cst_32 : f32 to vector<2x32xf32>
    %97 = arith.addf %96, %95 : vector<2x32xf32>
    %98 = arith.divf %96, %97 : vector<2x32xf32>
    %99 = arith.mulf %90, %69 : vector<2x32xf32>
    %100 = arith.mulf %84, %92 : vector<2x32xf32>
    %101 = arith.addf %99, %100 : vector<2x32xf32>
    %102 = math.tanh %101 : vector<2x32xf32>
    %103 = arith.mulf %98, %102 : vector<2x32xf32>
    %104 = arith.index_cast %74 : i32 to index
    %c0_33 = arith.constant 0 : index
    %105 = vector.load %arg12[%104, %c0_33] : memref<16x32xf32, #tpu.memory_space<vmem>>, vector<2x32xf32>
    tpu.vector_store %arg12[%104, %c0_33], %103 {strides = array<i32>} : memref<16x32xf32, #tpu.memory_space<vmem>>, vector<2x32xf32>,
    %c3_i32 = arith.constant 3 : i32
    %c2_i32_34 = arith.constant 2 : i32
    %106 = arith.muli %c3_i32, %c2_i32_34 : i32
    %107 = arith.index_cast %106 : i32 to index
    %c0_35 = arith.constant 0 : index
    %108 = vector.load %arg11[%107, %c0_35] : memref<16x128xf32, #tpu.memory_space<vmem>>, vector<2x128xf32>
    %cst_36 = arith.constant dense<0.000000e+00> : vector<2x128xf32>
    %109 = tpu.matmul %103, %7, %cst_36 {dimension_numbers = #tpu.dot_dimension_numbers<[1], [0], [0], [1], [0, 0, 1, 1], [], []>} : vector<2x32xf32>, vector<32x128xf32>, vector<2x128xf32> -> vector<2x128xf32>
    %110 = arith.addf %108, %109 : vector<2x128xf32>
    %111 = vector.extract_strided_slice %110 {offsets = [0, 0], sizes = [2, 32], strides = [1, 1]} : vector<2x128xf32> to vector<2x32xf32>
    %112 = arith.negf %111 : vector<2x32xf32>
    %113 = math.exp %112 : vector<2x32xf32>
    %cst_37 = arith.constant 1.000000e+00 : f32
    %114 = vector.broadcast %cst_37 : f32 to vector<2x32xf32>
    %115 = arith.addf %114, %113 : vector<2x32xf32>
    %116 = arith.divf %114, %115 : vector<2x32xf32>
    %117 = vector.extract_strided_slice %110 {offsets = [0, 32], sizes = [2, 32], strides = [1, 1]} : vector<2x128xf32> to vector<2x32xf32>
    %118 = arith.negf %117 : vector<2x32xf32>
    %119 = math.exp %118 : vector<2x32xf32>
    %cst_38 = arith.constant 1.000000e+00 : f32
    %120 = vector.broadcast %cst_38 : f32 to vector<2x32xf32>
    %121 = arith.addf %120, %119 : vector<2x32xf32>
    %122 = arith.divf %120, %121 : vector<2x32xf32>
    %123 = vector.extract_strided_slice %110 {offsets = [0, 64], sizes = [2, 32], strides = [1, 1]} : vector<2x128xf32> to vector<2x32xf32>
    %124 = math.tanh %123 : vector<2x32xf32>
    %125 = vector.extract_strided_slice %110 {offsets = [0, 96], sizes = [2, 32], strides = [1, 1]} : vector<2x128xf32> to vector<2x32xf32>
    %126 = arith.negf %125 : vector<2x32xf32>
    %127 = math.exp %126 : vector<2x32xf32>
    %cst_39 = arith.constant 1.000000e+00 : f32
    %128 = vector.broadcast %cst_39 : f32 to vector<2x32xf32>
    %129 = arith.addf %128, %127 : vector<2x32xf32>
    %130 = arith.divf %128, %129 : vector<2x32xf32>
    %131 = arith.mulf %122, %101 : vector<2x32xf32>
    %132 = arith.mulf %116, %124 : vector<2x32xf32>
    %133 = arith.addf %131, %132 : vector<2x32xf32>
    %134 = math.tanh %133 : vector<2x32xf32>
    %135 = arith.mulf %130, %134 : vector<2x32xf32>
    %136 = arith.index_cast %106 : i32 to index
    %c0_40 = arith.constant 0 : index
    %137 = vector.load %arg12[%136, %c0_40] : memref<16x32xf32, #tpu.memory_space<vmem>>, vector<2x32xf32>
    tpu.vector_store %arg12[%136, %c0_40], %135 {strides = array<i32>} : memref<16x32xf32, #tpu.memory_space<vmem>>, vector<2x32xf32>,
    %c4_i32 = arith.constant 4 : i32
    %c2_i32_41 = arith.constant 2 : i32
    %138 = arith.muli %c4_i32, %c2_i32_41 : i32
    %139 = arith.index_cast %138 : i32 to index
    %c0_42 = arith.constant 0 : index
    %140 = vector.load %arg11[%139, %c0_42] : memref<16x128xf32, #tpu.memory_space<vmem>>, vector<2x128xf32>
    %cst_43 = arith.constant dense<0.000000e+00> : vector<2x128xf32>
    %141 = tpu.matmul %135, %7, %cst_43 {dimension_numbers = #tpu.dot_dimension_numbers<[1], [0], [0], [1], [0, 0, 1, 1], [], []>} : vector<2x32xf32>, vector<32x128xf32>, vector<2x128xf32> -> vector<2x128xf32>
    %142 = arith.addf %140, %141 : vector<2x128xf32>
    %143 = vector.extract_strided_slice %142 {offsets = [0, 0], sizes = [2, 32], strides = [1, 1]} : vector<2x128xf32> to vector<2x32xf32>
    %144 = arith.negf %143 : vector<2x32xf32>
    %145 = math.exp %144 : vector<2x32xf32>
    %cst_44 = arith.constant 1.000000e+00 : f32
    %146 = vector.broadcast %cst_44 : f32 to vector<2x32xf32>
    %147 = arith.addf %146, %145 : vector<2x32xf32>
    %148 = arith.divf %146, %147 : vector<2x32xf32>
    %149 = vector.extract_strided_slice %142 {offsets = [0, 32], sizes = [2, 32], strides = [1, 1]} : vector<2x128xf32> to vector<2x32xf32>
    %150 = arith.negf %149 : vector<2x32xf32>
    %151 = math.exp %150 : vector<2x32xf32>
    %cst_45 = arith.constant 1.000000e+00 : f32
    %152 = vector.broadcast %cst_45 : f32 to vector<2x32xf32>
    %153 = arith.addf %152, %151 : vector<2x32xf32>
    %154 = arith.divf %152, %153 : vector<2x32xf32>
    %155 = vector.extract_strided_slice %142 {offsets = [0, 64], sizes = [2, 32], strides = [1, 1]} : vector<2x128xf32> to vector<2x32xf32>
    %156 = math.tanh %155 : vector<2x32xf32>
    %157 = vector.extract_strided_slice %142 {offsets = [0, 96], sizes = [2, 32], strides = [1, 1]} : vector<2x128xf32> to vector<2x32xf32>
    %158 = arith.negf %157 : vector<2x32xf32>
    %159 = math.exp %158 : vector<2x32xf32>
    %cst_46 = arith.constant 1.000000e+00 : f32
    %160 = vector.broadcast %cst_46 : f32 to vector<2x32xf32>
    %161 = arith.addf %160, %159 : vector<2x32xf32>
    %162 = arith.divf %160, %161 : vector<2x32xf32>
    %163 = arith.mulf %154, %133 : vector<2x32xf32>
    %164 = arith.mulf %148, %156 : vector<2x32xf32>
    %165 = arith.addf %163, %164 : vector<2x32xf32>
    %166 = math.tanh %165 : vector<2x32xf32>
    %167 = arith.mulf %162, %166 : vector<2x32xf32>
    %168 = arith.index_cast %138 : i32 to index
    %c0_47 = arith.constant 0 : index
    %169 = vector.load %arg12[%168, %c0_47] : memref<16x32xf32, #tpu.memory_space<vmem>>, vector<2x32xf32>
    tpu.vector_store %arg12[%168, %c0_47], %167 {strides = array<i32>} : memref<16x32xf32, #tpu.memory_space<vmem>>, vector<2x32xf32>,
    %c5_i32 = arith.constant 5 : i32
    %c2_i32_48 = arith.constant 2 : i32
    %170 = arith.muli %c5_i32, %c2_i32_48 : i32
    %171 = arith.index_cast %170 : i32 to index
    %c0_49 = arith.constant 0 : index
    %172 = vector.load %arg11[%171, %c0_49] : memref<16x128xf32, #tpu.memory_space<vmem>>, vector<2x128xf32>
    %cst_50 = arith.constant dense<0.000000e+00> : vector<2x128xf32>
    %173 = tpu.matmul %167, %7, %cst_50 {dimension_numbers = #tpu.dot_dimension_numbers<[1], [0], [0], [1], [0, 0, 1, 1], [], []>} : vector<2x32xf32>, vector<32x128xf32>, vector<2x128xf32> -> vector<2x128xf32>
    %174 = arith.addf %172, %173 : vector<2x128xf32>
    %175 = vector.extract_strided_slice %174 {offsets = [0, 0], sizes = [2, 32], strides = [1, 1]} : vector<2x128xf32> to vector<2x32xf32>
    %176 = arith.negf %175 : vector<2x32xf32>
    %177 = math.exp %176 : vector<2x32xf32>
    %cst_51 = arith.constant 1.000000e+00 : f32
    %178 = vector.broadcast %cst_51 : f32 to vector<2x32xf32>
    %179 = arith.addf %178, %177 : vector<2x32xf32>
    %180 = arith.divf %178, %179 : vector<2x32xf32>
    %181 = vector.extract_strided_slice %174 {offsets = [0, 32], sizes = [2, 32], strides = [1, 1]} : vector<2x128xf32> to vector<2x32xf32>
    %182 = arith.negf %181 : vector<2x32xf32>
    %183 = math.exp %182 : vector<2x32xf32>
    %cst_52 = arith.constant 1.000000e+00 : f32
    %184 = vector.broadcast %cst_52 : f32 to vector<2x32xf32>
    %185 = arith.addf %184, %183 : vector<2x32xf32>
    %186 = arith.divf %184, %185 : vector<2x32xf32>
    %187 = vector.extract_strided_slice %174 {offsets = [0, 64], sizes = [2, 32], strides = [1, 1]} : vector<2x128xf32> to vector<2x32xf32>
    %188 = math.tanh %187 : vector<2x32xf32>
    %189 = vector.extract_strided_slice %174 {offsets = [0, 96], sizes = [2, 32], strides = [1, 1]} : vector<2x128xf32> to vector<2x32xf32>
    %190 = arith.negf %189 : vector<2x32xf32>
    %191 = math.exp %190 : vector<2x32xf32>
    %cst_53 = arith.constant 1.000000e+00 : f32
    %192 = vector.broadcast %cst_53 : f32 to vector<2x32xf32>
    %193 = arith.addf %192, %191 : vector<2x32xf32>
    %194 = arith.divf %192, %193 : vector<2x32xf32>
    %195 = arith.mulf %186, %165 : vector<2x32xf32>
    %196 = arith.mulf %180, %188 : vector<2x32xf32>
    %197 = arith.addf %195, %196 : vector<2x32xf32>
    %198 = math.tanh %197 : vector<2x32xf32>
    %199 = arith.mulf %194, %198 : vector<2x32xf32>
    %200 = arith.index_cast %170 : i32 to index
    %c0_54 = arith.constant 0 : index
    %201 = vector.load %arg12[%200, %c0_54] : memref<16x32xf32, #tpu.memory_space<vmem>>, vector<2x32xf32>
    tpu.vector_store %arg12[%200, %c0_54], %199 {strides = array<i32>} : memref<16x32xf32, #tpu.memory_space<vmem>>, vector<2x32xf32>,
    %c6_i32 = arith.constant 6 : i32
    %c2_i32_55 = arith.constant 2 : i32
    %202 = arith.muli %c6_i32, %c2_i32_55 : i32
    %203 = arith.index_cast %202 : i32 to index
    %c0_56 = arith.constant 0 : index
    %204 = vector.load %arg11[%203, %c0_56] : memref<16x128xf32, #tpu.memory_space<vmem>>, vector<2x128xf32>
    %cst_57 = arith.constant dense<0.000000e+00> : vector<2x128xf32>
    %205 = tpu.matmul %199, %7, %cst_57 {dimension_numbers = #tpu.dot_dimension_numbers<[1], [0], [0], [1], [0, 0, 1, 1], [], []>} : vector<2x32xf32>, vector<32x128xf32>, vector<2x128xf32> -> vector<2x128xf32>
    %206 = arith.addf %204, %205 : vector<2x128xf32>
    %207 = vector.extract_strided_slice %206 {offsets = [0, 0], sizes = [2, 32], strides = [1, 1]} : vector<2x128xf32> to vector<2x32xf32>
    %208 = arith.negf %207 : vector<2x32xf32>
    %209 = math.exp %208 : vector<2x32xf32>
    %cst_58 = arith.constant 1.000000e+00 : f32
    %210 = vector.broadcast %cst_58 : f32 to vector<2x32xf32>
    %211 = arith.addf %210, %209 : vector<2x32xf32>
    %212 = arith.divf %210, %211 : vector<2x32xf32>
    %213 = vector.extract_strided_slice %206 {offsets = [0, 32], sizes = [2, 32], strides = [1, 1]} : vector<2x128xf32> to vector<2x32xf32>
    %214 = arith.negf %213 : vector<2x32xf32>
    %215 = math.exp %214 : vector<2x32xf32>
    %cst_59 = arith.constant 1.000000e+00 : f32
    %216 = vector.broadcast %cst_59 : f32 to vector<2x32xf32>
    %217 = arith.addf %216, %215 : vector<2x32xf32>
    %218 = arith.divf %216, %217 : vector<2x32xf32>
    %219 = vector.extract_strided_slice %206 {offsets = [0, 64], sizes = [2, 32], strides = [1, 1]} : vector<2x128xf32> to vector<2x32xf32>
    %220 = math.tanh %219 : vector<2x32xf32>
    %221 = vector.extract_strided_slice %206 {offsets = [0, 96], sizes = [2, 32], strides = [1, 1]} : vector<2x128xf32> to vector<2x32xf32>
    %222 = arith.negf %221 : vector<2x32xf32>
    %223 = math.exp %222 : vector<2x32xf32>
    %cst_60 = arith.constant 1.000000e+00 : f32
    %224 = vector.broadcast %cst_60 : f32 to vector<2x32xf32>
    %225 = arith.addf %224, %223 : vector<2x32xf32>
    %226 = arith.divf %224, %225 : vector<2x32xf32>
    %227 = arith.mulf %218, %197 : vector<2x32xf32>
    %228 = arith.mulf %212, %220 : vector<2x32xf32>
    %229 = arith.addf %227, %228 : vector<2x32xf32>
    %230 = math.tanh %229 : vector<2x32xf32>
    %231 = arith.mulf %226, %230 : vector<2x32xf32>
    %232 = arith.index_cast %202 : i32 to index
    %c0_61 = arith.constant 0 : index
    %233 = vector.load %arg12[%232, %c0_61] : memref<16x32xf32, #tpu.memory_space<vmem>>, vector<2x32xf32>
    tpu.vector_store %arg12[%232, %c0_61], %231 {strides = array<i32>} : memref<16x32xf32, #tpu.memory_space<vmem>>, vector<2x32xf32>,
    %c7_i32 = arith.constant 7 : i32
    %c2_i32_62 = arith.constant 2 : i32
    %234 = arith.muli %c7_i32, %c2_i32_62 : i32
    %235 = arith.index_cast %234 : i32 to index
    %c0_63 = arith.constant 0 : index
    %236 = vector.load %arg11[%235, %c0_63] : memref<16x128xf32, #tpu.memory_space<vmem>>, vector<2x128xf32>
    %cst_64 = arith.constant dense<0.000000e+00> : vector<2x128xf32>
    %237 = tpu.matmul %231, %7, %cst_64 {dimension_numbers = #tpu.dot_dimension_numbers<[1], [0], [0], [1], [0, 0, 1, 1], [], []>} : vector<2x32xf32>, vector<32x128xf32>, vector<2x128xf32> -> vector<2x128xf32>
    %238 = arith.addf %236, %237 : vector<2x128xf32>
    %239 = vector.extract_strided_slice %238 {offsets = [0, 0], sizes = [2, 32], strides = [1, 1]} : vector<2x128xf32> to vector<2x32xf32>
    %240 = arith.negf %239 : vector<2x32xf32>
    %241 = math.exp %240 : vector<2x32xf32>
    %cst_65 = arith.constant 1.000000e+00 : f32
    %242 = vector.broadcast %cst_65 : f32 to vector<2x32xf32>
    %243 = arith.addf %242, %241 : vector<2x32xf32>
    %244 = arith.divf %242, %243 : vector<2x32xf32>
    %245 = vector.extract_strided_slice %238 {offsets = [0, 32], sizes = [2, 32], strides = [1, 1]} : vector<2x128xf32> to vector<2x32xf32>
    %246 = arith.negf %245 : vector<2x32xf32>
    %247 = math.exp %246 : vector<2x32xf32>
    %cst_66 = arith.constant 1.000000e+00 : f32
    %248 = vector.broadcast %cst_66 : f32 to vector<2x32xf32>
    %249 = arith.addf %248, %247 : vector<2x32xf32>
    %250 = arith.divf %248, %249 : vector<2x32xf32>
    %251 = vector.extract_strided_slice %238 {offsets = [0, 64], sizes = [2, 32], strides = [1, 1]} : vector<2x128xf32> to vector<2x32xf32>
    %252 = math.tanh %251 : vector<2x32xf32>
    %253 = vector.extract_strided_slice %238 {offsets = [0, 96], sizes = [2, 32], strides = [1, 1]} : vector<2x128xf32> to vector<2x32xf32>
    %254 = arith.negf %253 : vector<2x32xf32>
    %255 = math.exp %254 : vector<2x32xf32>
    %cst_67 = arith.constant 1.000000e+00 : f32
    %256 = vector.broadcast %cst_67 : f32 to vector<2x32xf32>
    %257 = arith.addf %256, %255 : vector<2x32xf32>
    %258 = arith.divf %256, %257 : vector<2x32xf32>
    %259 = arith.mulf %250, %229 : vector<2x32xf32>
    %260 = arith.mulf %244, %252 : vector<2x32xf32>
    %261 = arith.addf %259, %260 : vector<2x32xf32>
    %262 = math.tanh %261 : vector<2x32xf32>
    %263 = arith.mulf %258, %262 : vector<2x32xf32>
    %264 = arith.index_cast %234 : i32 to index
    %c0_68 = arith.constant 0 : index
    %265 = vector.load %arg12[%264, %c0_68] : memref<16x32xf32, #tpu.memory_space<vmem>>, vector<2x32xf32>
    tpu.vector_store %arg12[%264, %c0_68], %263 {strides = array<i32>} : memref<16x32xf32, #tpu.memory_space<vmem>>, vector<2x32xf32>,
    %c8_i32 = arith.constant 8 : i32
    %c0_69 = arith.constant 0 : index
    %c0_70 = arith.constant 0 : index
    %266 = vector.load %arg9[%c0_69, %c0_70] : memref<2x32xf32, #tpu.memory_space<vmem>>, vector<2x32xf32>
    tpu.vector_store %arg9[%c0_69, %c0_70], %263 {strides = array<i32>} : memref<2x32xf32, #tpu.memory_space<vmem>>, vector<2x32xf32>,
    %c0_71 = arith.constant 0 : index
    %c0_72 = arith.constant 0 : index
    %267 = vector.load %arg10[%c0_71, %c0_72] : memref<2x32xf32, #tpu.memory_space<vmem>>, vector<2x32xf32>
    tpu.vector_store %arg10[%c0_71, %c0_72], %261 {strides = array<i32>} : memref<2x32xf32, #tpu.memory_space<vmem>>, vector<2x32xf32>,
    %c0_73 = arith.constant 0 : index
    %c0_74 = arith.constant 0 : index
    %268 = vector.load %arg12[%c0_73, %c0_74] : memref<16x32xf32, #tpu.memory_space<vmem>>, vector<16x32xf32>
    %c0_75 = arith.constant 0 : index
    %c0_76 = arith.constant 0 : index
    %269 = vector.load %arg6[%c0_75, %c0_76] : memref<32x64xf32, #tpu.memory_space<vmem>>, vector<32x64xf32>
    %cst_77 = arith.constant dense<0.000000e+00> : vector<16x64xf32>
    %270 = tpu.matmul %268, %269, %cst_77 {dimension_numbers = #tpu.dot_dimension_numbers<[1], [0], [0], [1], [0, 0, 1, 1], [], []>} : vector<16x32xf32>, vector<32x64xf32>, vector<16x64xf32> -> vector<16x64xf32>
    %c0_78 = arith.constant 0 : index
    %c0_79 = arith.constant 0 : index
    %271 = vector.load %arg7[%c0_78, %c0_79] : memref<1x64xf32, #tpu.memory_space<vmem>>, vector<1x64xf32>
    %272 = vector.broadcast %271 : vector<1x64xf32> to vector<16x64xf32>
    %273 = arith.addf %270, %272 : vector<16x64xf32>
    %c0_80 = arith.constant 0 : index
    %c0_81 = arith.constant 0 : index
    %274 = vector.load %arg8[%c0_80, %c0_81] : memref<16x64xf32, #tpu.memory_space<vmem>>, vector<16x64xf32>
    tpu.vector_store %arg8[%c0_80, %c0_81], %273 {strides = array<i32>} : memref<16x64xf32, #tpu.memory_space<vmem>>, vector<16x64xf32>,
    return
  }
}

</mosaic_0001>

<llo_original>
// kernel: tpu_custom_call.1
$region0: #{tpu_custom_call.1}
  #allocation0 [shape = 'u32[]', space=smem, size = 0x4, offset = 0x4, fixed_abs, tag = 'smem constant byte address 0x4 - core index']
  #allocation1 [shape = 'u32[144,128]{1,0:T(1,128)}', space=vmem, size = 0x12000, scoped, tag = 'internal scratch']
  #allocation2 [shape = 'f32[16,128]{1,0:T(8,128)}', space=vmem, size = 0x2000, scoped, tag = 'scratch operand']
  #allocation3 [shape = 'f32[16,32]{1,0:T(8,128)}', space=vmem, size = 0x2000, scoped, tag = 'scratch operand']
  %s0 = inlined_call_operand.hbm [shape: f32[16,16], index: 0, kind: input, shape index: {}]
  %s1 = inlined_call_operand.hbm [shape: f32[16,128], index: 1, kind: input, shape index: {}]
  %s2 = inlined_call_operand.hbm [shape: f32[32,128], index: 2, kind: input, shape index: {}]
  %s3 = inlined_call_operand.vmem [shape: f32[1,128], index: 3, kind: input, shape index: {}]
  %s4 = inlined_call_operand.vmem [shape: f32[2,32], index: 4, kind: input, shape index: {}]
  %s5 = inlined_call_operand.vmem [shape: f32[2,32], index: 5, kind: input, shape index: {}]
  %s6 = inlined_call_operand.hbm [shape: f32[32,64], index: 6, kind: input, shape index: {}]
  %s7 = inlined_call_operand.vmem [shape: f32[1,64], index: 7, kind: input, shape index: {}]
  %s8 = inlined_call_operand.hbm [shape: f32[16,64], index: 8, kind: output, shape index: {0}]
  %s9 = inlined_call_operand.hbm [shape: f32[2,32], index: 9, kind: output, shape index: {1}]
  %s10 = inlined_call_operand.hbm [shape: f32[2,32], index: 10, kind: output, shape index: {2}]
  %11 = xla_tuple %s8, %s9, %s10
  %s12 = sld [smem:[#allocation0]]
  $region74: #{tpu_custom_call.1} parent=0
    _
  %s14 = ssub.s32 1, %s12
  %s15 = scalar_select 0, %s14, %s12
  $region1: #{tpu_custom_call.1} parent=0
    #allocation4 [shape = 'u8[8192]{0}', space=vmem, size = 0x2000, scoped, tag = 'input window, operand 0, single buffered']
    #allocation5 [shape = 's32[1]{0}', space=sflag, size = 0x4, scoped, tag = 'scoped memory for tpu_custom_call.1']
    #allocation6 [shape = 's32[1]{0}', space=sflag, size = 0x4, scoped, tag = 'scoped memory for tpu_custom_call.1']
    #allocation7 [shape = 'u8[8192]{0}', space=vmem, size = 0x2000, scoped, tag = 'input window, operand 1, single buffered']
    #allocation8 [shape = 's32[1]{0}', space=sflag, size = 0x4, scoped, tag = 'scoped memory for tpu_custom_call.1']
    #allocation9 [shape = 'u8[16384]{0}', space=vmem, size = 0x4000, scoped, tag = 'input window, operand 2, single buffered']
    #allocation10 [shape = 'u8[16384]{0}', space=vmem, size = 0x4000, scoped, tag = 'input window, operand 6, single buffered']
    #allocation11 [shape = 's32[1]{0}', space=sflag, size = 0x4, scoped, tag = 'scoped memory for tpu_custom_call.1']
    #allocation12 [shape = 'u8[8192]{0}', space=vmem, size = 0x2000, scoped, tag = 'output window, operand 0, single buffered']
    #allocation13 [shape = 'u8[1024]{0}', space=vmem, size = 0x400, scoped, tag = 'output window, operand 1, single buffered']
    #allocation14 [shape = 's32[1]{0}', space=sflag, size = 0x4, scoped, tag = 'scoped memory for tpu_custom_call.1']
    #allocation15 [shape = 'u8[1024]{0}', space=vmem, size = 0x400, scoped, tag = 'output window, operand 2, single buffered']
    %16 = vsyncpa [#allocation5], 0
    %17 = vsyncpa [#allocation8], 0
    %18 = vsyncpa [#allocation11], 0
    %19 = vsyncpa [#allocation6], 0
    %20 = vsyncpa [#allocation14], 0
    // Predicated region
    $region2: #{tpu_custom_call.1} parent=1 // pred_check
      _
    $region3: #{tpu_custom_call.1} parent=1 // pred_check_branch
      %22 = sbr.rel (0) target = $region5
    $region4: #{tpu_custom_call.1} parent=1 // pred_region
      %s24 = ssub.s32 256, 256
      %25 = vsyncadd [#allocation5], %s24
      %s26 = sshll.u32 [#allocation4], 4
      %s27 = int_to_ptr.vmem [resolvable:$true] %s26
      %32 = dma.hbm_to_vmem [thread:$0]  %s0, 256, %s27, [#allocation5], 128, 128, 8
    $region5: #{tpu_custom_call.1} parent=1 // pred_fallthru
      _
    // Predicated region
    $region6: #{tpu_custom_call.1} parent=1 // pred_check
      _
    $region7: #{tpu_custom_call.1} parent=1 // pred_check_branch
      %34 = sbr.rel (0) target = $region9
    $region8: #{tpu_custom_call.1} parent=1 // pred_region
      %s36 = ssub.s32 256, 256
      %37 = vsyncadd [#allocation8], %s36
      %s38 = sshll.u32 [#allocation7], 4
      %s39 = int_to_ptr.vmem [resolvable:$true] %s38
      %44 = dma.hbm_to_vmem [thread:$0]  %s1, 256, %s39, [#allocation8], 128, 128, 8
    $region9: #{tpu_custom_call.1} parent=1 // pred_fallthru
      _
    // Predicated region
    $region10: #{tpu_custom_call.1} parent=1 // pred_check
      _
    $region11: #{tpu_custom_call.1} parent=1 // pred_check_branch
      %46 = sbr.rel (0) target = $region13
    $region12: #{tpu_custom_call.1} parent=1 // pred_region
      %s48 = ssub.s32 512, 512
      %49 = vsyncadd [#allocation8], %s48
      %s50 = sshll.u32 [#allocation9], 4
      %s51 = int_to_ptr.vmem [resolvable:$true] %s50
      %56 = dma.hbm_to_vmem [thread:$0]  %s2, 512, %s51, [#allocation8], 128, 128, 8
    $region13: #{tpu_custom_call.1} parent=1 // pred_fallthru
      _
    // Predicated region
    $region14: #{tpu_custom_call.1} parent=1 // pred_check
      _
    $region15: #{tpu_custom_call.1} parent=1 // pred_check_branch
      %58 = sbr.rel (0) target = $region17
    $region16: #{tpu_custom_call.1} parent=1 // pred_region
      _
    $region17: #{tpu_custom_call.1} parent=1 // pred_fallthru
      _
    // Predicated region
    $region18: #{tpu_custom_call.1} parent=1 // pred_check
      _
    $region19: #{tpu_custom_call.1} parent=1 // pred_check_branch
      %60 = sbr.rel (0) target = $region21
    $region20: #{tpu_custom_call.1} parent=1 // pred_region
      _
    $region21: #{tpu_custom_call.1} parent=1 // pred_fallthru
      _
    // Predicated region
    $region22: #{tpu_custom_call.1} parent=1 // pred_check
      _
    $region23: #{tpu_custom_call.1} parent=1 // pred_check_branch
      %62 = sbr.rel (0) target = $region25
    $region24: #{tpu_custom_call.1} parent=1 // pred_region
      _
    $region25: #{tpu_custom_call.1} parent=1 // pred_fallthru
      _
    // Predicated region
    $region26: #{tpu_custom_call.1} parent=1 // pred_check
      _
    $region27: #{tpu_custom_call.1} parent=1 // pred_check_branch
      %64 = sbr.rel (0) target = $region29
    $region28: #{tpu_custom_call.1} parent=1 // pred_region
      %s66 = ssub.s32 512, 512
      %67 = vsyncadd [#allocation11], %s66
      %s68 = sshll.u32 [#allocation10], 4
      %s69 = int_to_ptr.vmem [resolvable:$true] %s68
      %74 = dma.hbm_to_vmem [thread:$0]  %s6, 512, %s69, [#allocation11], 128, 128, 8
    $region29: #{tpu_custom_call.1} parent=1 // pred_fallthru
      _
    // Predicated region
    $region30: #{tpu_custom_call.1} parent=1 // pred_check
      _
    $region31: #{tpu_custom_call.1} parent=1 // pred_check_branch
      %76 = sbr.rel (0) target = $region33
    $region32: #{tpu_custom_call.1} parent=1 // pred_region
      _
    $region33: #{tpu_custom_call.1} parent=1 // pred_fallthru
      _
    // Predicated region
    $region34: #{tpu_custom_call.1} parent=1 // pred_check
      _
    $region35: #{tpu_custom_call.1} parent=1 // pred_check_branch
      %78 = sbr.rel (0) target = $region37
    $region36: #{tpu_custom_call.1} parent=1 // pred_region
      %79 = dma.done [#allocation5], 256
    $region37: #{tpu_custom_call.1} parent=1 // pred_fallthru
      _
    // Predicated region
    $region38: #{tpu_custom_call.1} parent=1 // pred_check
      _
    $region39: #{tpu_custom_call.1} parent=1 // pred_check_branch
      %81 = sbr.rel (0) target = $region41
    $region40: #{tpu_custom_call.1} parent=1 // pred_region
      %82 = dma.done [#allocation8], 256
    $region41: #{tpu_custom_call.1} parent=1 // pred_fallthru
      _
    // Predicated region
    $region42: #{tpu_custom_call.1} parent=1 // pred_check
      _
    $region43: #{tpu_custom_call.1} parent=1 // pred_check_branch
      %84 = sbr.rel (0) target = $region45
    $region44: #{tpu_custom_call.1} parent=1 // pred_region
      %85 = dma.done [#allocation8], 512
    $region45: #{tpu_custom_call.1} parent=1 // pred_fallthru
      _
    // Predicated region
    $region46: #{tpu_custom_call.1} parent=1 // pred_check
      _
    $region47: #{tpu_custom_call.1} parent=1 // pred_check_branch
      %87 = sbr.rel (0) target = $region49
    $region48: #{tpu_custom_call.1} parent=1 // pred_region
      %88 = dma.done [#allocation11], 512
    $region49: #{tpu_custom_call.1} parent=1 // pred_fallthru
      _
    %v89 = vld [vmem:[#allocation4] sm:$0xff]
    %v90 = vld [vmem:[#allocation4 + $0x8] sm:$0xff]
    %v91 = vld [vmem:[#allocation7] sm:$0xff]
    %v92 = vld [vmem:[#allocation7 + $0x8] sm:$0xff]
    %v93 = vld [vmem:[%s3] sm:$0x1]
    %v95 = vlaneseq
    %v96 = vshrl.u32 %v95, 7
    %v97 = vsub.s32 0, %v96
    %v98 = vrot.slane %v93, %v97
    %vm100 = vcmask 130048
    %v102 = vsel %vm100, %v89, 0
    %v105 = vsel %vm100, %v90, 0
    %107 = vmatprep.subr.mxu0 0.0
    %108 = vmatpush1.msra.mxu0 0.0
    %109 = vmatprep.subr.mxu0 0.0
    %110 = vmatpush1.msra.mxu0 0.0
    %111 = vmatprep.subr.mxu0 0.0
    %112 = vmatpush1.msra.mxu0 0.0
    %113 = vmatprep.subr.mxu0 0.0
    %114 = vmatpush1.msra.mxu0 0.0
    %115 = vmatprep.subr.mxu0 0.0
    %116 = vmatpush1.msra.mxu0 0.0
    %117 = vmatprep.subr.mxu0 0.0
    %118 = vmatpush1.msra.mxu0 0.0
    %119 = vmatprep.subr.mxu0 0.0
    %120 = vmatpush1.msra.mxu0 0.0
    %121 = vmatprep.subr.mxu0 0.0
    %122 = vmatpush1.msra.mxu0 0.0
    %123 = vmatprep.subr.mxu0 0.0
    %124 = vmatpush1.msra.mxu0 0.0
    %125 = vmatprep.subr.mxu0 0.0
    %126 = vmatpush1.msra.mxu0 0.0
    %127 = vmatprep.subr.mxu0 0.0
    %128 = vmatpush1.msra.mxu0 0.0
    %129 = vmatprep.subr.mxu0 0.0
    %130 = vmatpush1.msra.mxu0 0.0
    %131 = vmatprep.subr.mxu0 0.0
    %132 = vmatpush1.msra.mxu0 0.0
    %133 = vmatprep.subr.mxu0 0.0
    %134 = vmatpush1.msra.mxu0 0.0
    %135 = vmatprep.subr.mxu0 0.0
    %136 = vmatpush1.msra.mxu0 %v92
    %137 = vmatprep.subr.mxu0 0.0
    %138 = vmatpush1.msra.mxu0 %v91
    %139 = vmatprep.subr.mxu0 0.0
    %140 = vmatpush2.msra.mxu0 0.0
    %141 = vmatprep.subr.mxu0 0.0
    %142 = vmatpush2.msra.mxu0 0.0
    %143 = vmatprep.subr.mxu0 0.0
    %144 = vmatpush2.msra.mxu0 0.0
    %145 = vmatprep.subr.mxu0 0.0
    %146 = vmatpush2.msra.mxu0 0.0
    %147 = vmatprep.subr.mxu0 0.0
    %148 = vmatpush2.msra.mxu0 0.0
    %149 = vmatprep.subr.mxu0 0.0
    %150 = vmatpush2.msra.mxu0 0.0
    %151 = vmatprep.subr.mxu0 0.0
    %152 = vmatpush2.msra.mxu0 0.0
    %153 = vmatprep.subr.mxu0 0.0
    %154 = vmatpush2.msra.mxu0 0.0
    %155 = vmatprep.subr.mxu0 0.0
    %156 = vmatpush2.msra.mxu0 0.0
    %157 = vmatprep.subr.mxu0 0.0
    %158 = vmatpush2.msra.mxu0 0.0
    %159 = vmatprep.subr.mxu0 0.0
    %160 = vmatpush2.msra.mxu0 0.0
    %161 = vmatprep.subr.mxu0 0.0
    %162 = vmatpush2.msra.mxu0 0.0
    %163 = vmatprep.subr.mxu0 0.0
    %164 = vmatpush2.msra.mxu0 0.0
    %165 = vmatprep.subr.mxu0 0.0
    %166 = vmatpush2.msra.mxu0 0.0
    %167 = vmatprep.subr.mxu0 0.0
    %168 = vmatpush2.msra.mxu0 0.0
    %169 = vmatprep.subr.mxu0 0.0
    %170 = vmatpush2.msra.mxu0 0.0
    %171 = vmatprep.mubr.f32.mxu0 0.0
    %172 = vmatmul.mubr.f32.gmra.mxu0 %v102
    %v173 = vpop.f32.mrf.mxu0
    %v174 = vadd.f32 %v98, %v173
    %v175 = vpop.f32.mrf.mxu0
    %176 = vmatprep.mubr.f32.mxu0 0.0
    %177 = vmatmul.mubr.f32.gmra.mxu0 %v105
    %v178 = vpop.f32.mrf.mxu0
    %v179 = vadd.f32 %v98, %v178
    %v180 = vpop.f32.mrf.mxu0
    %181 = vdwg.mxu0
    %182 = vst [vmem:[#allocation2] sm:$0xff] %v174
    %183 = vst [vmem:[#allocation2 + $0x8] sm:$0xff] %v179
    %v184 = vld [vmem:[#allocation9] sm:$0xff]
    %v185 = vld [vmem:[#allocation9 + $0x8] sm:$0xff]
    %v186 = vld [vmem:[#allocation9 + $0x10] sm:$0xff]
    %v187 = vld [vmem:[#allocation9 + $0x18] sm:$0xff]
    %v188 = vld [vmem:[%s4] sm:$0x3]
    %v189 = vld [vmem:[%s5] sm:$0x3]
    %v190 = vld [vmem:[#allocation2] sm:$0x3]
    %vm191 = vcmask 261120
    %v193 = vsel %vm191, %v188, 0
    %195 = vmatprep.subr.mxu0 0.0
    %196 = vmatpush1.msra.mxu0 0.0
    %197 = vmatprep.subr.mxu0 0.0
    %198 = vmatpush1.msra.mxu0 0.0
    %199 = vmatprep.subr.mxu0 0.0
    %200 = vmatpush1.msra.mxu0 0.0
    %201 = vmatprep.subr.mxu0 0.0
    %202 = vmatpush1.msra.mxu0 0.0
    %203 = vmatprep.subr.mxu0 0.0
    %204 = vmatpush1.msra.mxu0 0.0
    %205 = vmatprep.subr.mxu0 0.0
    %206 = vmatpush1.msra.mxu0 0.0
    %207 = vmatprep.subr.mxu0 0.0
    %208 = vmatpush1.msra.mxu0 0.0
    %209 = vmatprep.subr.mxu0 0.0
    %210 = vmatpush1.msra.mxu0 0.0
    %211 = vmatprep.subr.mxu0 0.0
    %212 = vmatpush1.msra.mxu0 0.0
    %213 = vmatprep.subr.mxu0 0.0
    %214 = vmatpush1.msra.mxu0 0.0
    %215 = vmatprep.subr.mxu0 0.0
    %216 = vmatpush1.msra.mxu0 0.0
    %217 = vmatprep.subr.mxu0 0.0
    %218 = vmatpush1.msra.mxu0 0.0
    %219 = vmatprep.subr.mxu0 0.0
    %220 = vmatpush1.msra.mxu0 %v187
    %221 = vmatprep.subr.mxu0 0.0
    %222 = vmatpush1.msra.mxu0 %v186
    %223 = vmatprep.subr.mxu0 0.0
    %224 = vmatpush1.msra.mxu0 %v185
    %225 = vmatprep.subr.mxu0 0.0
    %226 = vmatpush1.msra.mxu0 %v184
    %227 = vmatprep.subr.mxu0 0.0
    %228 = vmatpush2.msra.mxu0 0.0
    %229 = vmatprep.subr.mxu0 0.0
    %230 = vmatpush2.msra.mxu0 0.0
    %231 = vmatprep.subr.mxu0 0.0
    %232 = vmatpush2.msra.mxu0 0.0
    %233 = vmatprep.subr.mxu0 0.0
    %234 = vmatpush2.msra.mxu0 0.0
    %235 = vmatprep.subr.mxu0 0.0
    %236 = vmatpush2.msra.mxu0 0.0
    %237 = vmatprep.subr.mxu0 0.0
    %238 = vmatpush2.msra.mxu0 0.0
    %239 = vmatprep.subr.mxu0 0.0
    %240 = vmatpush2.msra.mxu0 0.0
    %241 = vmatprep.subr.mxu0 0.0
    %242 = vmatpush2.msra.mxu0 0.0
    %243 = vmatprep.subr.mxu0 0.0
    %244 = vmatpush2.msra.mxu0 0.0
    %245 = vmatprep.subr.mxu0 0.0
    %246 = vmatpush2.msra.mxu0 0.0
    %247 = vmatprep.subr.mxu0 0.0
    %248 = vmatpush2.msra.mxu0 0.0
    %249 = vmatprep.subr.mxu0 0.0
    %250 = vmatpush2.msra.mxu0 0.0
    %251 = vmatprep.subr.mxu0 0.0
    %252 = vmatpush2.msra.mxu0 0.0
    %253 = vmatprep.subr.mxu0 0.0
    %254 = vmatpush2.msra.mxu0 0.0
    %255 = vmatprep.subr.mxu0 0.0
    %256 = vmatpush2.msra.mxu0 0.0
    %257 = vmatprep.subr.mxu0 0.0
    %258 = vmatpush2.msra.mxu0 0.0
    %259 = vmatprep.mubr.f32.mxu0 0.0
    %260 = vmatmul.mubr.f32.gmra.mxu0 %v193
    %v261 = vpop.f32.mrf.mxu0
    %v262 = vadd.f32 0.0, %v261
    %v263 = vpop.f32.mrf.mxu0
    %264 = vdwg.mxu0
    %v265 = vadd.f32 %v190, %v262
    %v266 = vxor.u32 %v265, 2147483648
    %v267 = vmul.f32 %v266, 1.442695
    %v268 = vpow.pop %v267
    %v269 = vadd.f32 %v268, 1.0
    %v270 = vrcp.pop %v269
    %v271 = vmul.f32 1.0, %v270
    %v272 = vtanh.pop %v265
    %274 = vrot.lane.b32.xlu0 %v189, 32
    %v275 = vpop.permute.xlu0 %274
    %v277 = vmul.f32 %v271, %v275
    %279 = vrot.lane.b32.xlu0 %v272, 64
    %v280 = vpop.permute.xlu0 %279
    %v282 = vmul.f32 %v271, %v280
    %284 = vrot.lane.b32.xlu0 %v282, 32
    %v285 = vpop.permute.xlu0 %284
    %v287 = vadd.f32 %v277, %v285
    %v288 = vtanh.pop %v287
    %290 = vrot.lane.b32.xlu0 %v288, 64
    %v291 = vpop.permute.xlu0 %290
    %v293 = vmul.f32 %v271, %v291
    %295 = vrot.lane.b32.xlu0 %v293, 32
    %v296 = vpop.permute.xlu0 %295
    %vm298 = vcmask 254976
    %299 = vst.msk [vmem:[#allocation3] sm:$0x3] %vm298, %v296
    %v300 = vld [vmem:[#allocation2 + $0x2] sm:$0x3]
    %v301 = vsel %vm191, %v296, 0
    %303 = vmatprep.subr.mxu0 0.0
    %304 = vmatpush1.msra.mxu0 0.0
    %305 = vmatprep.subr.mxu0 0.0
    %306 = vmatpush1.msra.mxu0 0.0
    %307 = vmatprep.subr.mxu0 0.0
    %308 = vmatpush1.msra.mxu0 0.0
    %309 = vmatprep.subr.mxu0 0.0
    %310 = vmatpush1.msra.mxu0 0.0
    %311 = vmatprep.subr.mxu0 0.0
    %312 = vmatpush1.msra.mxu0 0.0
    %313 = vmatprep.subr.mxu0 0.0
    %314 = vmatpush1.msra.mxu0 0.0
    %315 = vmatprep.subr.mxu0 0.0
    %316 = vmatpush1.msra.mxu0 0.0
    %317 = vmatprep.subr.mxu0 0.0
    %318 = vmatpush1.msra.mxu0 0.0
    %319 = vmatprep.subr.mxu0 0.0
    %320 = vmatpush1.msra.mxu0 0.0
    %321 = vmatprep.subr.mxu0 0.0
    %322 = vmatpush1.msra.mxu0 0.0
    %323 = vmatprep.subr.mxu0 0.0
    %324 = vmatpush1.msra.mxu0 0.0
    %325 = vmatprep.subr.mxu0 0.0
    %326 = vmatpush1.msra.mxu0 0.0
    %327 = vmatprep.subr.mxu0 0.0
    %328 = vmatpush1.msra.mxu0 %v187
    %329 = vmatprep.subr.mxu0 0.0
    %330 = vmatpush1.msra.mxu0 %v186
    %331 = vmatprep.subr.mxu0 0.0
    %332 = vmatpush1.msra.mxu0 %v185
    %333 = vmatprep.subr.mxu0 0.0
    %334 = vmatpush1.msra.mxu0 %v184
    %335 = vmatprep.subr.mxu0 0.0
    %336 = vmatpush2.msra.mxu0 0.0
    %337 = vmatprep.subr.mxu0 0.0
    %338 = vmatpush2.msra.mxu0 0.0
    %339 = vmatprep.subr.mxu0 0.0
    %340 = vmatpush2.msra.mxu0 0.0
    %341 = vmatprep.subr.mxu0 0.0
    %342 = vmatpush2.msra.mxu0 0.0
    %343 = vmatprep.subr.mxu0 0.0
    %344 = vmatpush2.msra.mxu0 0.0
    %345 = vmatprep.subr.mxu0 0.0
    %346 = vmatpush2.msra.mxu0 0.0
    %347 = vmatprep.subr.mxu0 0.0
    %348 = vmatpush2.msra.mxu0 0.0
    %349 = vmatprep.subr.mxu0 0.0
    %350 = vmatpush2.msra.mxu0 0.0
    %351 = vmatprep.subr.mxu0 0.0
    %352 = vmatpush2.msra.mxu0 0.0
    %353 = vmatprep.subr.mxu0 0.0
    %354 = vmatpush2.msra.mxu0 0.0
    %355 = vmatprep.subr.mxu0 0.0
    %356 = vmatpush2.msra.mxu0 0.0
    %357 = vmatprep.subr.mxu0 0.0
    %358 = vmatpush2.msra.mxu0 0.0
    %359 = vmatprep.subr.mxu0 0.0
    %360 = vmatpush2.msra.mxu0 0.0
    %361 = vmatprep.subr.mxu0 0.0
    %362 = vmatpush2.msra.mxu0 0.0
    %363 = vmatprep.subr.mxu0 0.0
    %364 = vmatpush2.msra.mxu0 0.0
    %365 = vmatprep.subr.mxu0 0.0
    %366 = vmatpush2.msra.mxu0 0.0
    %367 = vmatprep.mubr.f32.mxu0 0.0
    %368 = vmatmul.mubr.f32.gmra.mxu0 %v301
    %v369 = vpop.f32.mrf.mxu0
    %v370 = vadd.f32 0.0, %v369
    %v371 = vpop.f32.mrf.mxu0
    %372 = vdwg.mxu0
    %v373 = vadd.f32 %v300, %v370
    %v374 = vxor.u32 %v373, 2147483648
    %v375 = vmul.f32 %v374, 1.442695
    %v376 = vpow.pop %v375
    %v377 = vadd.f32 %v376, 1.0
    %v378 = vrcp.pop %v377
    %v379 = vmul.f32 1.0, %v378
    %v380 = vtanh.pop %v373
    %v381 = vmul.f32 %v379, %v287
    %383 = vrot.lane.b32.xlu0 %v380, 64
    %v384 = vpop.permute.xlu0 %383
    %v386 = vmul.f32 %v379, %v384
    %388 = vrot.lane.b32.xlu0 %v386, 32
    %v389 = vpop.permute.xlu0 %388
    %v391 = vadd.f32 %v381, %v389
    %v392 = vtanh.pop %v391
    %394 = vrot.lane.b32.xlu0 %v392, 64
    %v395 = vpop.permute.xlu0 %394
    %v397 = vmul.f32 %v379, %v395
    %399 = vrot.lane.b32.xlu0 %v397, 32
    %v400 = vpop.permute.xlu0 %399
    %402 = vst.msk [vmem:[#allocation3 + $0x2] sm:$0x3] %vm298, %v400
    %v403 = vld [vmem:[#allocation2 + $0x4] sm:$0x3]
    %v404 = vsel %vm191, %v400, 0
    %406 = vmatprep.subr.mxu0 0.0
    %407 = vmatpush1.msra.mxu0 0.0
    %408 = vmatprep.subr.mxu0 0.0
    %409 = vmatpush1.msra.mxu0 0.0
    %410 = vmatprep.subr.mxu0 0.0
    %411 = vmatpush1.msra.mxu0 0.0
    %412 = vmatprep.subr.mxu0 0.0
    %413 = vmatpush1.msra.mxu0 0.0
    %414 = vmatprep.subr.mxu0 0.0
    %415 = vmatpush1.msra.mxu0 0.0
    %416 = vmatprep.subr.mxu0 0.0
    %417 = vmatpush1.msra.mxu0 0.0
    %418 = vmatprep.subr.mxu0 0.0
    %419 = vmatpush1.msra.mxu0 0.0
    %420 = vmatprep.subr.mxu0 0.0
    %421 = vmatpush1.msra.mxu0 0.0
    %422 = vmatprep.subr.mxu0 0.0
    %423 = vmatpush1.msra.mxu0 0.0
    %424 = vmatprep.subr.mxu0 0.0
    %425 = vmatpush1.msra.mxu0 0.0
    %426 = vmatprep.subr.mxu0 0.0
    %427 = vmatpush1.msra.mxu0 0.0
    %428 = vmatprep.subr.mxu0 0.0
    %429 = vmatpush1.msra.mxu0 0.0
    %430 = vmatprep.subr.mxu0 0.0
    %431 = vmatpush1.msra.mxu0 %v187
    %432 = vmatprep.subr.mxu0 0.0
    %433 = vmatpush1.msra.mxu0 %v186
    %434 = vmatprep.subr.mxu0 0.0
    %435 = vmatpush1.msra.mxu0 %v185
    %436 = vmatprep.subr.mxu0 0.0
    %437 = vmatpush1.msra.mxu0 %v184
    %438 = vmatprep.subr.mxu0 0.0
    %439 = vmatpush2.msra.mxu0 0.0
    %440 = vmatprep.subr.mxu0 0.0
    %441 = vmatpush2.msra.mxu0 0.0
    %442 = vmatprep.subr.mxu0 0.0
    %443 = vmatpush2.msra.mxu0 0.0
    %444 = vmatprep.subr.mxu0 0.0
    %445 = vmatpush2.msra.mxu0 0.0
    %446 = vmatprep.subr.mxu0 0.0
    %447 = vmatpush2.msra.mxu0 0.0
    %448 = vmatprep.subr.mxu0 0.0
    %449 = vmatpush2.msra.mxu0 0.0
    %450 = vmatprep.subr.mxu0 0.0
    %451 = vmatpush2.msra.mxu0 0.0
    %452 = vmatprep.subr.mxu0 0.0
    %453 = vmatpush2.msra.mxu0 0.0
    %454 = vmatprep.subr.mxu0 0.0
    %455 = vmatpush2.msra.mxu0 0.0
    %456 = vmatprep.subr.mxu0 0.0
    %457 = vmatpush2.msra.mxu0 0.0
    %458 = vmatprep.subr.mxu0 0.0
    %459 = vmatpush2.msra.mxu0 0.0
    %460 = vmatprep.subr.mxu0 0.0
    %461 = vmatpush2.msra.mxu0 0.0
    %462 = vmatprep.subr.mxu0 0.0
    %463 = vmatpush2.msra.mxu0 0.0
    %464 = vmatprep.subr.mxu0 0.0
    %465 = vmatpush2.msra.mxu0 0.0
    %466 = vmatprep.subr.mxu0 0.0
    %467 = vmatpush2.msra.mxu0 0.0
    %468 = vmatprep.subr.mxu0 0.0
    %469 = vmatpush2.msra.mxu0 0.0
    %470 = vmatprep.mubr.f32.mxu0 0.0
    %471 = vmatmul.mubr.f32.gmra.mxu0 %v404
    %v472 = vpop.f32.mrf.mxu0
    %v473 = vadd.f32 0.0, %v472
    %v474 = vpop.f32.mrf.mxu0
    %475 = vdwg.mxu0
    %v476 = vadd.f32 %v403, %v473
    %v477 = vxor.u32 %v476, 2147483648
    %v478 = vmul.f32 %v477, 1.442695
    %v479 = vpow.pop %v478
    %v480 = vadd.f32 %v479, 1.0
    %v481 = vrcp.pop %v480
    %v482 = vmul.f32 1.0, %v481
    %v483 = vtanh.pop %v476
    %v484 = vmul.f32 %v482, %v391
    %486 = vrot.lane.b32.xlu0 %v483, 64
    %v487 = vpop.permute.xlu0 %486
    %v489 = vmul.f32 %v482, %v487
    %491 = vrot.lane.b32.xlu0 %v489, 32
    %v492 = vpop.permute.xlu0 %491
    %v494 = vadd.f32 %v484, %v492
    %v495 = vtanh.pop %v494
    %497 = vrot.lane.b32.xlu0 %v495, 64
    %v498 = vpop.permute.xlu0 %497
    %v500 = vmul.f32 %v482, %v498
    %502 = vrot.lane.b32.xlu0 %v500, 32
    %v503 = vpop.permute.xlu0 %502
    %505 = vst.msk [vmem:[#allocation3 + $0x4] sm:$0x3] %vm298, %v503
    %v506 = vld [vmem:[#allocation2 + $0x6] sm:$0x3]
    %v507 = vsel %vm191, %v503, 0
    %509 = vmatprep.subr.mxu0 0.0
    %510 = vmatpush1.msra.mxu0 0.0
    %511 = vmatprep.subr.mxu0 0.0
    %512 = vmatpush1.msra.mxu0 0.0
    %513 = vmatprep.subr.mxu0 0.0
    %514 = vmatpush1.msra.mxu0 0.0
    %515 = vmatprep.subr.mxu0 0.0
    %516 = vmatpush1.msra.mxu0 0.0
    %517 = vmatprep.subr.mxu0 0.0
    %518 = vmatpush1.msra.mxu0 0.0
    %519 = vmatprep.subr.mxu0 0.0
    %520 = vmatpush1.msra.mxu0 0.0
    %521 = vmatprep.subr.mxu0 0.0
    %522 = vmatpush1.msra.mxu0 0.0
    %523 = vmatprep.subr.mxu0 0.0
    %524 = vmatpush1.msra.mxu0 0.0
    %525 = vmatprep.subr.mxu0 0.0
    %526 = vmatpush1.msra.mxu0 0.0
    %527 = vmatprep.subr.mxu0 0.0
    %528 = vmatpush1.msra.mxu0 0.0
    %529 = vmatprep.subr.mxu0 0.0
    %530 = vmatpush1.msra.mxu0 0.0
    %531 = vmatprep.subr.mxu0 0.0
    %532 = vmatpush1.msra.mxu0 0.0
    %533 = vmatprep.subr.mxu0 0.0
    %534 = vmatpush1.msra.mxu0 %v187
    %535 = vmatprep.subr.mxu0 0.0
    %536 = vmatpush1.msra.mxu0 %v186
    %537 = vmatprep.subr.mxu0 0.0
    %538 = vmatpush1.msra.mxu0 %v185
    %539 = vmatprep.subr.mxu0 0.0
    %540 = vmatpush1.msra.mxu0 %v184
    %541 = vmatprep.subr.mxu0 0.0
    %542 = vmatpush2.msra.mxu0 0.0
    %543 = vmatprep.subr.mxu0 0.0
    %544 = vmatpush2.msra.mxu0 0.0
    %545 = vmatprep.subr.mxu0 0.0
    %546 = vmatpush2.msra.mxu0 0.0
    %547 = vmatprep.subr.mxu0 0.0
    %548 = vmatpush2.msra.mxu0 0.0
    %549 = vmatprep.subr.mxu0 0.0
    %550 = vmatpush2.msra.mxu0 0.0
    %551 = vmatprep.subr.mxu0 0.0
    %552 = vmatpush2.msra.mxu0 0.0
    %553 = vmatprep.subr.mxu0 0.0
    %554 = vmatpush2.msra.mxu0 0.0
    %555 = vmatprep.subr.mxu0 0.0
    %556 = vmatpush2.msra.mxu0 0.0
    %557 = vmatprep.subr.mxu0 0.0
    %558 = vmatpush2.msra.mxu0 0.0
    %559 = vmatprep.subr.mxu0 0.0
    %560 = vmatpush2.msra.mxu0 0.0
    %561 = vmatprep.subr.mxu0 0.0
    %562 = vmatpush2.msra.mxu0 0.0
    %563 = vmatprep.subr.mxu0 0.0
    %564 = vmatpush2.msra.mxu0 0.0
    %565 = vmatprep.subr.mxu0 0.0
    %566 = vmatpush2.msra.mxu0 0.0
    %567 = vmatprep.subr.mxu0 0.0
    %568 = vmatpush2.msra.mxu0 0.0
    %569 = vmatprep.subr.mxu0 0.0
    %570 = vmatpush2.msra.mxu0 0.0
    %571 = vmatprep.subr.mxu0 0.0
    %572 = vmatpush2.msra.mxu0 0.0
    %573 = vmatprep.mubr.f32.mxu0 0.0
    %574 = vmatmul.mubr.f32.gmra.mxu0 %v507
    %v575 = vpop.f32.mrf.mxu0
    %v576 = vadd.f32 0.0, %v575
    %v577 = vpop.f32.mrf.mxu0
    %578 = vdwg.mxu0
    %v579 = vadd.f32 %v506, %v576
    %v580 = vxor.u32 %v579, 2147483648
    %v581 = vmul.f32 %v580, 1.442695
    %v582 = vpow.pop %v581
    %v583 = vadd.f32 %v582, 1.0
    %v584 = vrcp.pop %v583
    %v585 = vmul.f32 1.0, %v584
    %v586 = vtanh.pop %v579
    %v587 = vmul.f32 %v585, %v494
    %589 = vrot.lane.b32.xlu0 %v586, 64
    %v590 = vpop.permute.xlu0 %589
    %v592 = vmul.f32 %v585, %v590
    %594 = vrot.lane.b32.xlu0 %v592, 32
    %v595 = vpop.permute.xlu0 %594
    %v597 = vadd.f32 %v587, %v595
    %v598 = vtanh.pop %v597
    %600 = vrot.lane.b32.xlu0 %v598, 64
    %v601 = vpop.permute.xlu0 %600
    %v603 = vmul.f32 %v585, %v601
    %605 = vrot.lane.b32.xlu0 %v603, 32
    %v606 = vpop.permute.xlu0 %605
    %608 = vst.msk [vmem:[#allocation3 + $0x6] sm:$0x3] %vm298, %v606
    %v609 = vld [vmem:[#allocation2 + $0x8] sm:$0x3]
    %v610 = vsel %vm191, %v606, 0
    %612 = vmatprep.subr.mxu0 0.0
    %613 = vmatpush1.msra.mxu0 0.0
    %614 = vmatprep.subr.mxu0 0.0
    %615 = vmatpush1.msra.mxu0 0.0
    %616 = vmatprep.subr.mxu0 0.0
    %617 = vmatpush1.msra.mxu0 0.0
    %618 = vmatprep.subr.mxu0 0.0
    %619 = vmatpush1.msra.mxu0 0.0
    %620 = vmatprep.subr.mxu0 0.0
    %621 = vmatpush1.msra.mxu0 0.0
    %622 = vmatprep.subr.mxu0 0.0
    %623 = vmatpush1.msra.mxu0 0.0
    %624 = vmatprep.subr.mxu0 0.0
    %625 = vmatpush1.msra.mxu0 0.0
    %626 = vmatprep.subr.mxu0 0.0
    %627 = vmatpush1.msra.mxu0 0.0
    %628 = vmatprep.subr.mxu0 0.0
    %629 = vmatpush1.msra.mxu0 0.0
    %630 = vmatprep.subr.mxu0 0.0
    %631 = vmatpush1.msra.mxu0 0.0
    %632 = vmatprep.subr.mxu0 0.0
    %633 = vmatpush1.msra.mxu0 0.0
    %634 = vmatprep.subr.mxu0 0.0
    %635 = vmatpush1.msra.mxu0 0.0
    %636 = vmatprep.subr.mxu0 0.0
    %637 = vmatpush1.msra.mxu0 %v187
    %638 = vmatprep.subr.mxu0 0.0
    %639 = vmatpush1.msra.mxu0 %v186
    %640 = vmatprep.subr.mxu0 0.0
    %641 = vmatpush1.msra.mxu0 %v185
    %642 = vmatprep.subr.mxu0 0.0
    %643 = vmatpush1.msra.mxu0 %v184
    %644 = vmatprep.subr.mxu0 0.0
    %645 = vmatpush2.msra.mxu0 0.0
    %646 = vmatprep.subr.mxu0 0.0
    %647 = vmatpush2.msra.mxu0 0.0
    %648 = vmatprep.subr.mxu0 0.0
    %649 = vmatpush2.msra.mxu0 0.0
    %650 = vmatprep.subr.mxu0 0.0
    %651 = vmatpush2.msra.mxu0 0.0
    %652 = vmatprep.subr.mxu0 0.0
    %653 = vmatpush2.msra.mxu0 0.0
    %654 = vmatprep.subr.mxu0 0.0
    %655 = vmatpush2.msra.mxu0 0.0
    %656 = vmatprep.subr.mxu0 0.0
    %657 = vmatpush2.msra.mxu0 0.0
    %658 = vmatprep.subr.mxu0 0.0
    %659 = vmatpush2.msra.mxu0 0.0
    %660 = vmatprep.subr.mxu0 0.0
    %661 = vmatpush2.msra.mxu0 0.0
    %662 = vmatprep.subr.mxu0 0.0
    %663 = vmatpush2.msra.mxu0 0.0
    %664 = vmatprep.subr.mxu0 0.0
    %665 = vmatpush2.msra.mxu0 0.0
    %666 = vmatprep.subr.mxu0 0.0
    %667 = vmatpush2.msra.mxu0 0.0
    %668 = vmatprep.subr.mxu0 0.0
    %669 = vmatpush2.msra.mxu0 0.0
    %670 = vmatprep.subr.mxu0 0.0
    %671 = vmatpush2.msra.mxu0 0.0
    %672 = vmatprep.subr.mxu0 0.0
    %673 = vmatpush2.msra.mxu0 0.0
    %674 = vmatprep.subr.mxu0 0.0
    %675 = vmatpush2.msra.mxu0 0.0
    %676 = vmatprep.mubr.f32.mxu0 0.0
    %677 = vmatmul.mubr.f32.gmra.mxu0 %v610
    %v678 = vpop.f32.mrf.mxu0
    %v679 = vadd.f32 0.0, %v678
    %v680 = vpop.f32.mrf.mxu0
    %681 = vdwg.mxu0
    %v682 = vadd.f32 %v609, %v679
    %v683 = vxor.u32 %v682, 2147483648
    %v684 = vmul.f32 %v683, 1.442695
    %v685 = vpow.pop %v684
    %v686 = vadd.f32 %v685, 1.0
    %v687 = vrcp.pop %v686
    %v688 = vmul.f32 1.0, %v687
    %v689 = vtanh.pop %v682
    %v690 = vmul.f32 %v688, %v597
    %692 = vrot.lane.b32.xlu0 %v689, 64
    %v693 = vpop.permute.xlu0 %692
    %v695 = vmul.f32 %v688, %v693
    %697 = vrot.lane.b32.xlu0 %v695, 32
    %v698 = vpop.permute.xlu0 %697
    %v700 = vadd.f32 %v690, %v698
    %v701 = vtanh.pop %v700
    %703 = vrot.lane.b32.xlu0 %v701, 64
    %v704 = vpop.permute.xlu0 %703
    %v706 = vmul.f32 %v688, %v704
    %708 = vrot.lane.b32.xlu0 %v706, 32
    %v709 = vpop.permute.xlu0 %708
    %711 = vst.msk [vmem:[#allocation3 + $0x8] sm:$0x3] %vm298, %v709
    %v712 = vld [vmem:[#allocation2 + $0xa] sm:$0x3]
    %v713 = vsel %vm191, %v709, 0
    %715 = vmatprep.subr.mxu0 0.0
    %716 = vmatpush1.msra.mxu0 0.0
    %717 = vmatprep.subr.mxu0 0.0
    %718 = vmatpush1.msra.mxu0 0.0
    %719 = vmatprep.subr.mxu0 0.0
    %720 = vmatpush1.msra.mxu0 0.0
    %721 = vmatprep.subr.mxu0 0.0
    %722 = vmatpush1.msra.mxu0 0.0
    %723 = vmatprep.subr.mxu0 0.0
    %724 = vmatpush1.msra.mxu0 0.0
    %725 = vmatprep.subr.mxu0 0.0
    %726 = vmatpush1.msra.mxu0 0.0
    %727 = vmatprep.subr.mxu0 0.0
    %728 = vmatpush1.msra.mxu0 0.0
    %729 = vmatprep.subr.mxu0 0.0
    %730 = vmatpush1.msra.mxu0 0.0
    %731 = vmatprep.subr.mxu0 0.0
    %732 = vmatpush1.msra.mxu0 0.0
    %733 = vmatprep.subr.mxu0 0.0
    %734 = vmatpush1.msra.mxu0 0.0
    %735 = vmatprep.subr.mxu0 0.0
    %736 = vmatpush1.msra.mxu0 0.0
    %737 = vmatprep.subr.mxu0 0.0
    %738 = vmatpush1.msra.mxu0 0.0
    %739 = vmatprep.subr.mxu0 0.0
    %740 = vmatpush1.msra.mxu0 %v187
    %741 = vmatprep.subr.mxu0 0.0
    %742 = vmatpush1.msra.mxu0 %v186
    %743 = vmatprep.subr.mxu0 0.0
    %744 = vmatpush1.msra.mxu0 %v185
    %745 = vmatprep.subr.mxu0 0.0
    %746 = vmatpush1.msra.mxu0 %v184
    %747 = vmatprep.subr.mxu0 0.0
    %748 = vmatpush2.msra.mxu0 0.0
    %749 = vmatprep.subr.mxu0 0.0
    %750 = vmatpush2.msra.mxu0 0.0
    %751 = vmatprep.subr.mxu0 0.0
    %752 = vmatpush2.msra.mxu0 0.0
    %753 = vmatprep.subr.mxu0 0.0
    %754 = vmatpush2.msra.mxu0 0.0
    %755 = vmatprep.subr.mxu0 0.0
    %756 = vmatpush2.msra.mxu0 0.0
    %757 = vmatprep.subr.mxu0 0.0
    %758 = vmatpush2.msra.mxu0 0.0
    %759 = vmatprep.subr.mxu0 0.0
    %760 = vmatpush2.msra.mxu0 0.0
    %761 = vmatprep.subr.mxu0 0.0
    %762 = vmatpush2.msra.mxu0 0.0
    %763 = vmatprep.subr.mxu0 0.0
    %764 = vmatpush2.msra.mxu0 0.0
    %765 = vmatprep.subr.mxu0 0.0
    %766 = vmatpush2.msra.mxu0 0.0
    %767 = vmatprep.subr.mxu0 0.0
    %768 = vmatpush2.msra.mxu0 0.0
    %769 = vmatprep.subr.mxu0 0.0
    %770 = vmatpush2.msra.mxu0 0.0
    %771 = vmatprep.subr.mxu0 0.0
    %772 = vmatpush2.msra.mxu0 0.0
    %773 = vmatprep.subr.mxu0 0.0
    %774 = vmatpush2.msra.mxu0 0.0
    %775 = vmatprep.subr.mxu0 0.0
    %776 = vmatpush2.msra.mxu0 0.0
    %777 = vmatprep.subr.mxu0 0.0
    %778 = vmatpush2.msra.mxu0 0.0
    %779 = vmatprep.mubr.f32.mxu0 0.0
    %780 = vmatmul.mubr.f32.gmra.mxu0 %v713
    %v781 = vpop.f32.mrf.mxu0
    %v782 = vadd.f32 0.0, %v781
    %v783 = vpop.f32.mrf.mxu0
    %784 = vdwg.mxu0
    %v785 = vadd.f32 %v712, %v782
    %v786 = vxor.u32 %v785, 2147483648
    %v787 = vmul.f32 %v786, 1.442695
    %v788 = vpow.pop %v787
    %v789 = vadd.f32 %v788, 1.0
    %v790 = vrcp.pop %v789
    %v791 = vmul.f32 1.0, %v790
    %v792 = vtanh.pop %v785
    %v793 = vmul.f32 %v791, %v700
    %795 = vrot.lane.b32.xlu0 %v792, 64
    %v796 = vpop.permute.xlu0 %795
    %v798 = vmul.f32 %v791, %v796
    %800 = vrot.lane.b32.xlu0 %v798, 32
    %v801 = vpop.permute.xlu0 %800
    %v803 = vadd.f32 %v793, %v801
    %v804 = vtanh.pop %v803
    %806 = vrot.lane.b32.xlu0 %v804, 64
    %v807 = vpop.permute.xlu0 %806
    %v809 = vmul.f32 %v791, %v807
    %811 = vrot.lane.b32.xlu0 %v809, 32
    %v812 = vpop.permute.xlu0 %811
    %814 = vst.msk [vmem:[#allocation3 + $0xa] sm:$0x3] %vm298, %v812
    %v815 = vld [vmem:[#allocation2 + $0xc] sm:$0x3]
    %v816 = vsel %vm191, %v812, 0
    %818 = vmatprep.subr.mxu0 0.0
    %819 = vmatpush1.msra.mxu0 0.0
    %820 = vmatprep.subr.mxu0 0.0
    %821 = vmatpush1.msra.mxu0 0.0
    %822 = vmatprep.subr.mxu0 0.0
    %823 = vmatpush1.msra.mxu0 0.0
    %824 = vmatprep.subr.mxu0 0.0
    %825 = vmatpush1.msra.mxu0 0.0
    %826 = vmatprep.subr.mxu0 0.0
    %827 = vmatpush1.msra.mxu0 0.0
    %828 = vmatprep.subr.mxu0 0.0
    %829 = vmatpush1.msra.mxu0 0.0
    %830 = vmatprep.subr.mxu0 0.0
    %831 = vmatpush1.msra.mxu0 0.0
    %832 = vmatprep.subr.mxu0 0.0
    %833 = vmatpush1.msra.mxu0 0.0
    %834 = vmatprep.subr.mxu0 0.0
    %835 = vmatpush1.msra.mxu0 0.0
    %836 = vmatprep.subr.mxu0 0.0
    %837 = vmatpush1.msra.mxu0 0.0
    %838 = vmatprep.subr.mxu0 0.0
    %839 = vmatpush1.msra.mxu0 0.0
    %840 = vmatprep.subr.mxu0 0.0
    %841 = vmatpush1.msra.mxu0 0.0
    %842 = vmatprep.subr.mxu0 0.0
    %843 = vmatpush1.msra.mxu0 %v187
    %844 = vmatprep.subr.mxu0 0.0
    %845 = vmatpush1.msra.mxu0 %v186
    %846 = vmatprep.subr.mxu0 0.0
    %847 = vmatpush1.msra.mxu0 %v185
    %848 = vmatprep.subr.mxu0 0.0
    %849 = vmatpush1.msra.mxu0 %v184
    %850 = vmatprep.subr.mxu0 0.0
    %851 = vmatpush2.msra.mxu0 0.0
    %852 = vmatprep.subr.mxu0 0.0
    %853 = vmatpush2.msra.mxu0 0.0
    %854 = vmatprep.subr.mxu0 0.0
    %855 = vmatpush2.msra.mxu0 0.0
    %856 = vmatprep.subr.mxu0 0.0
    %857 = vmatpush2.msra.mxu0 0.0
    %858 = vmatprep.subr.mxu0 0.0
    %859 = vmatpush2.msra.mxu0 0.0
    %860 = vmatprep.subr.mxu0 0.0
    %861 = vmatpush2.msra.mxu0 0.0
    %862 = vmatprep.subr.mxu0 0.0
    %863 = vmatpush2.msra.mxu0 0.0
    %864 = vmatprep.subr.mxu0 0.0
    %865 = vmatpush2.msra.mxu0 0.0
    %866 = vmatprep.subr.mxu0 0.0
    %867 = vmatpush2.msra.mxu0 0.0
    %868 = vmatprep.subr.mxu0 0.0
    %869 = vmatpush2.msra.mxu0 0.0
    %870 = vmatprep.subr.mxu0 0.0
    %871 = vmatpush2.msra.mxu0 0.0
    %872 = vmatprep.subr.mxu0 0.0
    %873 = vmatpush2.msra.mxu0 0.0
    %874 = vmatprep.subr.mxu0 0.0
    %875 = vmatpush2.msra.mxu0 0.0
    %876 = vmatprep.subr.mxu0 0.0
    %877 = vmatpush2.msra.mxu0 0.0
    %878 = vmatprep.subr.mxu0 0.0
    %879 = vmatpush2.msra.mxu0 0.0
    %880 = vmatprep.subr.mxu0 0.0
    %881 = vmatpush2.msra.mxu0 0.0
    %882 = vmatprep.mubr.f32.mxu0 0.0
    %883 = vmatmul.mubr.f32.gmra.mxu0 %v816
    %v884 = vpop.f32.mrf.mxu0
    %v885 = vadd.f32 0.0, %v884
    %v886 = vpop.f32.mrf.mxu0
    %887 = vdwg.mxu0
    %v888 = vadd.f32 %v815, %v885
    %v889 = vxor.u32 %v888, 2147483648
    %v890 = vmul.f32 %v889, 1.442695
    %v891 = vpow.pop %v890
    %v892 = vadd.f32 %v891, 1.0
    %v893 = vrcp.pop %v892
    %v894 = vmul.f32 1.0, %v893
    %v895 = vtanh.pop %v888
    %v896 = vmul.f32 %v894, %v803
    %898 = vrot.lane.b32.xlu0 %v895, 64
    %v899 = vpop.permute.xlu0 %898
    %v901 = vmul.f32 %v894, %v899
    %903 = vrot.lane.b32.xlu0 %v901, 32
    %v904 = vpop.permute.xlu0 %903
    %v906 = vadd.f32 %v896, %v904
    %v907 = vtanh.pop %v906
    %909 = vrot.lane.b32.xlu0 %v907, 64
    %v910 = vpop.permute.xlu0 %909
    %v912 = vmul.f32 %v894, %v910
    %914 = vrot.lane.b32.xlu0 %v912, 32
    %v915 = vpop.permute.xlu0 %914
    %917 = vst.msk [vmem:[#allocation3 + $0xc] sm:$0x3] %vm298, %v915
    %v918 = vld [vmem:[#allocation2 + $0xe] sm:$0x3]
    %v919 = vsel %vm191, %v915, 0
    %921 = vmatprep.subr.mxu0 0.0
    %922 = vmatpush1.msra.mxu0 0.0
    %923 = vmatprep.subr.mxu0 0.0
    %924 = vmatpush1.msra.mxu0 0.0
    %925 = vmatprep.subr.mxu0 0.0
    %926 = vmatpush1.msra.mxu0 0.0
    %927 = vmatprep.subr.mxu0 0.0
    %928 = vmatpush1.msra.mxu0 0.0
    %929 = vmatprep.subr.mxu0 0.0
    %930 = vmatpush1.msra.mxu0 0.0
    %931 = vmatprep.subr.mxu0 0.0
    %932 = vmatpush1.msra.mxu0 0.0
    %933 = vmatprep.subr.mxu0 0.0
    %934 = vmatpush1.msra.mxu0 0.0
    %935 = vmatprep.subr.mxu0 0.0
    %936 = vmatpush1.msra.mxu0 0.0
    %937 = vmatprep.subr.mxu0 0.0
    %938 = vmatpush1.msra.mxu0 0.0
    %939 = vmatprep.subr.mxu0 0.0
    %940 = vmatpush1.msra.mxu0 0.0
    %941 = vmatprep.subr.mxu0 0.0
    %942 = vmatpush1.msra.mxu0 0.0
    %943 = vmatprep.subr.mxu0 0.0
    %944 = vmatpush1.msra.mxu0 0.0
    %945 = vmatprep.subr.mxu0 0.0
    %946 = vmatpush1.msra.mxu0 %v187
    %947 = vmatprep.subr.mxu0 0.0
    %948 = vmatpush1.msra.mxu0 %v186
    %949 = vmatprep.subr.mxu0 0.0
    %950 = vmatpush1.msra.mxu0 %v185
    %951 = vmatprep.subr.mxu0 0.0
    %952 = vmatpush1.msra.mxu0 %v184
    %953 = vmatprep.subr.mxu0 0.0
    %954 = vmatpush2.msra.mxu0 0.0
    %955 = vmatprep.subr.mxu0 0.0
    %956 = vmatpush2.msra.mxu0 0.0
    %957 = vmatprep.subr.mxu0 0.0
    %958 = vmatpush2.msra.mxu0 0.0
    %959 = vmatprep.subr.mxu0 0.0
    %960 = vmatpush2.msra.mxu0 0.0
    %961 = vmatprep.subr.mxu0 0.0
    %962 = vmatpush2.msra.mxu0 0.0
    %963 = vmatprep.subr.mxu0 0.0
    %964 = vmatpush2.msra.mxu0 0.0
    %965 = vmatprep.subr.mxu0 0.0
    %966 = vmatpush2.msra.mxu0 0.0
    %967 = vmatprep.subr.mxu0 0.0
    %968 = vmatpush2.msra.mxu0 0.0
    %969 = vmatprep.subr.mxu0 0.0
    %970 = vmatpush2.msra.mxu0 0.0
    %971 = vmatprep.subr.mxu0 0.0
    %972 = vmatpush2.msra.mxu0 0.0
    %973 = vmatprep.subr.mxu0 0.0
    %974 = vmatpush2.msra.mxu0 0.0
    %975 = vmatprep.subr.mxu0 0.0
    %976 = vmatpush2.msra.mxu0 0.0
    %977 = vmatprep.subr.mxu0 0.0
    %978 = vmatpush2.msra.mxu0 0.0
    %979 = vmatprep.subr.mxu0 0.0
    %980 = vmatpush2.msra.mxu0 0.0
    %981 = vmatprep.subr.mxu0 0.0
    %982 = vmatpush2.msra.mxu0 0.0
    %983 = vmatprep.subr.mxu0 0.0
    %984 = vmatpush2.msra.mxu0 0.0
    %985 = vmatprep.mubr.f32.mxu0 0.0
    %986 = vmatmul.mubr.f32.gmra.mxu0 %v919
    %v987 = vpop.f32.mrf.mxu0
    %v988 = vadd.f32 0.0, %v987
    %v989 = vpop.f32.mrf.mxu0
    %990 = vdwg.mxu0
    %v991 = vadd.f32 %v918, %v988
    %v992 = vxor.u32 %v991, 2147483648
    %v993 = vmul.f32 %v992, 1.442695
    %v994 = vpow.pop %v993
    %v995 = vadd.f32 %v994, 1.0
    %v996 = vrcp.pop %v995
    %v997 = vmul.f32 1.0, %v996
    %v998 = vtanh.pop %v991
    %v999 = vmul.f32 %v997, %v906
    %1001 = vrot.lane.b32.xlu0 %v998, 64
    %v1002 = vpop.permute.xlu0 %1001
    %v1004 = vmul.f32 %v997, %v1002
    %1006 = vrot.lane.b32.xlu0 %v1004, 32
    %v1007 = vpop.permute.xlu0 %1006
    %v1009 = vadd.f32 %v999, %v1007
    %v1010 = vtanh.pop %v1009
    %1012 = vrot.lane.b32.xlu0 %v1010, 64
    %v1013 = vpop.permute.xlu0 %1012
    %v1015 = vmul.f32 %v997, %v1013
    %1017 = vrot.lane.b32.xlu0 %v1015, 32
    %v1018 = vpop.permute.xlu0 %1017
    %1020 = vst.msk [vmem:[#allocation3 + $0xe] sm:$0x3] %vm298, %v1018
    %1021 = vst.msk [vmem:[#allocation13] sm:$0x3] %vm298, %v1018
    %1023 = vrot.lane.b32.xlu0 %v1009, 96
    %v1024 = vpop.permute.xlu0 %1023
    %1026 = vst.msk [vmem:[#allocation15] sm:$0x3] %vm298, %v1024
    %v1027 = vld [vmem:[#allocation3] sm:$0xff]
    %v1028 = vld [vmem:[#allocation3 + $0x8] sm:$0xff]
    %v1029 = vld [vmem:[#allocation10] sm:$0xff]
    %v1030 = vld [vmem:[#allocation10 + $0x8] sm:$0xff]
    %v1031 = vld [vmem:[#allocation10 + $0x10] sm:$0xff]
    %v1032 = vld [vmem:[#allocation10 + $0x18] sm:$0xff]
    %v1033 = vld [vmem:[%s7] sm:$0x1]
    %v1035 = vlaneseq
    %v1036 = vshrl.u32 %v1035, 7
    %v1037 = vsub.s32 0, %v1036
    %v1038 = vrot.slane %v1033, %v1037
    %v1041 = vsel %vm191, %v1027, 0
    %v1044 = vsel %vm191, %v1028, 0
    %1046 = vmatprep.subr.mxu0 0.0
    %1047 = vmatpush1.msra.mxu0 0.0
    %1048 = vmatprep.subr.mxu0 0.0
    %1049 = vmatpush1.msra.mxu0 0.0
    %1050 = vmatprep.subr.mxu0 0.0
    %1051 = vmatpush1.msra.mxu0 0.0
    %1052 = vmatprep.subr.mxu0 0.0
    %1053 = vmatpush1.msra.mxu0 0.0
    %1054 = vmatprep.subr.mxu0 0.0
    %1055 = vmatpush1.msra.mxu0 0.0
    %1056 = vmatprep.subr.mxu0 0.0
    %1057 = vmatpush1.msra.mxu0 0.0
    %1058 = vmatprep.subr.mxu0 0.0
    %1059 = vmatpush1.msra.mxu0 0.0
    %1060 = vmatprep.subr.mxu0 0.0
    %1061 = vmatpush1.msra.mxu0 0.0
    %1062 = vmatprep.subr.mxu0 0.0
    %1063 = vmatpush1.msra.mxu0 0.0
    %1064 = vmatprep.subr.mxu0 0.0
    %1065 = vmatpush1.msra.mxu0 0.0
    %1066 = vmatprep.subr.mxu0 0.0
    %1067 = vmatpush1.msra.mxu0 0.0
    %1068 = vmatprep.subr.mxu0 0.0
    %1069 = vmatpush1.msra.mxu0 0.0
    %1070 = vmatprep.subr.mxu0 0.0
    %1071 = vmatpush1.msra.mxu0 %v1032
    %1072 = vmatprep.subr.mxu0 0.0
    %1073 = vmatpush1.msra.mxu0 %v1031
    %1074 = vmatprep.subr.mxu0 0.0
    %1075 = vmatpush1.msra.mxu0 %v1030
    %1076 = vmatprep.subr.mxu0 0.0
    %1077 = vmatpush1.msra.mxu0 %v1029
    %1078 = vmatprep.subr.mxu0 0.0
    %1079 = vmatpush2.msra.mxu0 0.0
    %1080 = vmatprep.subr.mxu0 0.0
    %1081 = vmatpush2.msra.mxu0 0.0
    %1082 = vmatprep.subr.mxu0 0.0
    %1083 = vmatpush2.msra.mxu0 0.0
    %1084 = vmatprep.subr.mxu0 0.0
    %1085 = vmatpush2.msra.mxu0 0.0
    %1086 = vmatprep.subr.mxu0 0.0
    %1087 = vmatpush2.msra.mxu0 0.0
    %1088 = vmatprep.subr.mxu0 0.0
    %1089 = vmatpush2.msra.mxu0 0.0
    %1090 = vmatprep.subr.mxu0 0.0
    %1091 = vmatpush2.msra.mxu0 0.0
    %1092 = vmatprep.subr.mxu0 0.0
    %1093 = vmatpush2.msra.mxu0 0.0
    %1094 = vmatprep.subr.mxu0 0.0
    %1095 = vmatpush2.msra.mxu0 0.0
    %1096 = vmatprep.subr.mxu0 0.0
    %1097 = vmatpush2.msra.mxu0 0.0
    %1098 = vmatprep.subr.mxu0 0.0
    %1099 = vmatpush2.msra.mxu0 0.0
    %1100 = vmatprep.subr.mxu0 0.0
    %1101 = vmatpush2.msra.mxu0 0.0
    %1102 = vmatprep.subr.mxu0 0.0
    %1103 = vmatpush2.msra.mxu0 0.0
    %1104 = vmatprep.subr.mxu0 0.0
    %1105 = vmatpush2.msra.mxu0 0.0
    %1106 = vmatprep.subr.mxu0 0.0
    %1107 = vmatpush2.msra.mxu0 0.0
    %1108 = vmatprep.subr.mxu0 0.0
    %1109 = vmatpush2.msra.mxu0 0.0
    %1110 = vmatprep.mubr.f32.mxu0 0.0
    %1111 = vmatmul.mubr.f32.gmra.mxu0 %v1041
    %v1112 = vpop.f32.mrf.mxu0
    %v1113 = vadd.f32 %v1038, %v1112
    %v1114 = vpop.f32.mrf.mxu0
    %1115 = vmatprep.mubr.f32.mxu0 0.0
    %1116 = vmatmul.mubr.f32.gmra.mxu0 %v1044
    %v1117 = vpop.f32.mrf.mxu0
    %v1118 = vadd.f32 %v1038, %v1117
    %v1119 = vpop.f32.mrf.mxu0
    %1120 = vdwg.mxu0
    %vm1121 = vcmask 523264
    %1122 = vst.msk [vmem:[#allocation12] sm:$0xff] %vm1121, %v1113
    %1123 = vst.msk [vmem:[#allocation12 + $0x8] sm:$0xff] %vm1121, %v1118
    // Predicated region
    $region50: #{tpu_custom_call.1} parent=1 // pred_check
      _
    $region51: #{tpu_custom_call.1} parent=1 // pred_check_branch
      %1125 = sbr.rel (0) target = $region53
    $region52: #{tpu_custom_call.1} parent=1 // pred_region
      %s1127 = ssub.s32 256, 256
      %1128 = vsyncadd [#allocation6], %s1127
      %s1129 = sshll.u32 [#allocation12], 4
      %s1130 = int_to_ptr.vmem [resolvable:$true] %s1129
      %1135 = dma.vmem_to_hbm [thread:$0]  %s1130, 256, %s8, [#allocation6], 128, 128, 8
    $region53: #{tpu_custom_call.1} parent=1 // pred_fallthru
      _
    // Predicated region
    $region54: #{tpu_custom_call.1} parent=1 // pred_check
      _
    $region55: #{tpu_custom_call.1} parent=1 // pred_check_branch
      %1137 = sbr.rel (0) target = $region57
    $region56: #{tpu_custom_call.1} parent=1 // pred_region
      %s1139 = ssub.s32 32, 32
      %1140 = vsyncadd [#allocation14], %s1139
      %s1142 = sshll.u32 [#allocation13], 4
      %s1143 = int_to_ptr.vmem [resolvable:$true] %s1142
      %1145 = dma.vmem_to_hbm [thread:$0]  %s1143, 32, %s9, [#allocation14]
    $region57: #{tpu_custom_call.1} parent=1 // pred_fallthru
      _
    // Predicated region
    $region58: #{tpu_custom_call.1} parent=1 // pred_check
      _
    $region59: #{tpu_custom_call.1} parent=1 // pred_check_branch
      %1147 = sbr.rel (0) target = $region61
    $region60: #{tpu_custom_call.1} parent=1 // pred_region
      %s1149 = ssub.s32 32, 32
      %1150 = vsyncadd [#allocation14], %s1149
      %s1152 = sshll.u32 [#allocation15], 4
      %s1153 = int_to_ptr.vmem [resolvable:$true] %s1152
      %1155 = dma.vmem_to_hbm [thread:$0]  %s1153, 32, %s10, [#allocation14]
    $region61: #{tpu_custom_call.1} parent=1 // pred_fallthru
      _
    // Predicated region
    $region62: #{tpu_custom_call.1} parent=1 // pred_check
      _
    $region63: #{tpu_custom_call.1} parent=1 // pred_check_branch
      %1157 = sbr.rel (0) target = $region65
    $region64: #{tpu_custom_call.1} parent=1 // pred_region
      %1158 = dma.done [#allocation6], 256
    $region65: #{tpu_custom_call.1} parent=1 // pred_fallthru
      _
    // Predicated region
    $region66: #{tpu_custom_call.1} parent=1 // pred_check
      _
    $region67: #{tpu_custom_call.1} parent=1 // pred_check_branch
      %1160 = sbr.rel (0) target = $region69
    $region68: #{tpu_custom_call.1} parent=1 // pred_region
      %1161 = dma.done [#allocation14], 32
    $region69: #{tpu_custom_call.1} parent=1 // pred_fallthru
      _
    // Predicated region
    $region70: #{tpu_custom_call.1} parent=1 // pred_check
      _
    $region71: #{tpu_custom_call.1} parent=1 // pred_check_branch
      %1163 = sbr.rel (0) target = $region73
    $region72: #{tpu_custom_call.1} parent=1 // pred_region
      %1164 = dma.done [#allocation14], 32
    $region73: #{tpu_custom_call.1} parent=1 // pred_fallthru
      _
    %1165 = vsyncpa [#allocation5], 1
    %1166 = vsyncpa [#allocation8], 1
    %1167 = vsyncpa [#allocation11], 1
    %1168 = vsyncpa [#allocation6], 1
    %1169 = vsyncpa [#allocation14], 1

</llo_original>
